<compile_context>
chip_gen: v7x
topology: tpu7x:2x2x1
jax: 0.10.0
libtpu: 0.0.40
codegen_flags: <defaults>
</compile_context>

<pallas_src>
import math

import jax
import jax.numpy as jnp
from jax.experimental import pallas as pl
from jax.experimental.pallas import tpu as pltpu


def _largest_divisor_le(n, k):
    """Largest divisor of n that is <= k (>= 1)."""
    for d in range(min(k, n), 0, -1):
        if n % d == 0:
            return d
    return 1


def _default_vmem_limit_bytes():
    """Per-generation VMEM request with headroom (v7x ~48 MiB, v5e/v6e ~96 MiB)."""
    try:
        cap = pltpu.get_tpu_info().vmem_capacity_bytes
    except Exception:
        cap = 64 * 1024 * 1024  # conservative fallback
    return int(max(min(cap * 3 // 4, 100 * 1024 * 1024), 32 * 1024 * 1024))


def _upsample_convT_kernel(x_ref, xt_ref, xb_ref, w_ref, b_ref, o_ref, xpad_ref):
    """One (batch, row-tile) block of ConvTranspose2d(C, C, 4, stride 2, pad 1).

    x_ref   : (1, TH, W, C)     current input row tile (original dtype, unpadded)
    xt_ref  : (1, 1, W, C)      input row row0-1 (clamped; zero-masked at rb==0)
    xb_ref  : (1, 1, W, C)      input row row0+TH (clamped; zero-masked at rb==last)
    w_ref   : (2, 6C, 2C)       per-row-parity fused weights (compute dtype)
    b_ref   : (1, 2C)           bias tiled twice (f32)
    o_ref   : (1, TH, 2, W, 2C) output tile: o[0,p,a,q,b*C+c] = y[2*(row0+p)+a, 2*q+b, c]
    xpad_ref: (TH+2, W+2, C)    VMEM scratch: zero-padded input tile (compute dtype)
    """
    th = x_ref.shape[1]
    w = x_ref.shape[2]
    c = x_ref.shape[3]
    cdt = xpad_ref.dtype
    rb = pl.program_id(1)
    last = pl.num_programs(1) - 1

    # ---- Build the zero-padded (TH+2, W+2, C) tile in VMEM (pad folded into
    #      the kernel -- no HBM pad pass).  Scratch row j = padded row row0+j,
    #      scratch col m = padded col m; borders outside the image are zero.
    zcol = jnp.zeros((th + 2, 1, c), cdt)
    xpad_ref[:, pl.ds(0, 1), :] = zcol
    xpad_ref[:, pl.ds(w + 1, 1), :] = zcol
    xpad_ref[pl.ds(1, th), pl.ds(1, w), :] = x_ref[0].astype(cdt)
    top = jnp.where(rb > 0, xt_ref[0], 0.0).astype(cdt)        # (1, W, C)
    bot = jnp.where(rb < last, xb_ref[0], 0.0).astype(cdt)     # (1, W, C)
    xpad_ref[pl.ds(0, 1), pl.ds(1, w), :] = top
    xpad_ref[pl.ds(th + 1, 1), pl.ds(1, w), :] = bot

    # Bias broadcast hoisted out of the (unrolled) parity loop.
    bias_row = jnp.broadcast_to(b_ref[...].astype(jnp.float32), (th * w, 2 * c))

    # ---- Polyphase transposed conv: per output-row parity `a`, one fused MXU
    #      matmul (TH*W, 6C) @ (6C, 2C) covers both column parities at once.
    for a in range(2):
        slabs = []
        for dh in range(2):            # tap row offset
            for coff in range(3):      # padded-column offset (dedup'd across b)
                slabs.append(xpad_ref[pl.ds(a + dh, th), pl.ds(coff, w), :])
        patch = jnp.concatenate(slabs, axis=-1).reshape(th * w, 6 * c)
        acc = jnp.dot(patch, w_ref[a], preferred_element_type=jnp.float32)
        acc = acc + bias_row
        # TODO(synk): for tiny C (2C < 128) these stores are lane-masked; pad C
        # (real Imagen channels are >=128, i.e. already lane-dense) if it matters.
        o_ref[0, :, a, :, :] = acc.reshape(th, w, 2 * c).astype(o_ref.dtype)


def upsample_forward_nhwc(x_nhwc, weight_iohw, bias, *, tile_rows=16,
                          compute_dtype=jnp.bfloat16, vmem_limit_bytes=None):
    """ConvTranspose2d(C, C, (4,4), (2,2), (1,1)) on NHWC input -> (N, 2H, 2W, C)."""
    n, h, w, c = x_nhwc.shape
    out_dtype = x_nhwc.dtype

    # Row-tile: largest divisor of H <= tile_rows; guarantee >=2 grid steps total
    # so both v7x TensorCores get work even for N=1.
    th = _largest_divisor_le(h, max(1, tile_rows))
    if n * (h // th) < 2 and h > 1:
        th = _largest_divisor_le(h, max(1, h // 2))
    r = h // th

    if vmem_limit_bytes is None:
        vmem_limit_bytes = _default_vmem_limit_bytes()

    # Per-row-parity fused weights (2, 6C, 2C): K ordered (dh, col_offset, ci),
    # N ordered (col parity b, co); out-of-range (dw not in {0,1}) entries are 0.
    rows_a = []
    for a in range(2):
        kblocks = []
        for dh in range(2):
            for coff in range(3):
                cols_b = []
                for b in range(2):
                    dw = coff - b
                    if 0 <= dw <= 1:
                        cols_b.append(weight_iohw[:, :, 3 - a - 2 * dh, 3 - b - 2 * dw])
                    else:
                        cols_b.append(jnp.zeros((c, c), weight_iohw.dtype))
                kblocks.append(jnp.concatenate(cols_b, axis=1))     # (C, 2C)
        rows_a.append(jnp.concatenate(kblocks, axis=0))              # (6C, 2C)
    w6 = jnp.stack(rows_a, axis=0).astype(compute_dtype)             # (2, 6C, 2C)
    b2 = jnp.concatenate([bias, bias]).reshape(1, 2 * c).astype(jnp.float32)

    # Advisory cost estimate so XLA schedules surrounding ops sensibly.
    flops = 2 * n * (2 * h) * (2 * w) * c * (4 * c)
    bytes_accessed = (x_nhwc.size * x_nhwc.dtype.itemsize
                      + w6.size * w6.dtype.itemsize
                      + n * 2 * h * 2 * w * c * jnp.dtype(out_dtype).itemsize)
    cost = pl.CostEstimate(flops=int(flops), transcendentals=0,
                           bytes_accessed=int(bytes_accessed))

    out_phase = pl.pallas_call(
        _upsample_convT_kernel,
        out_shape=jax.ShapeDtypeStruct((n, h, 2, w, 2 * c), out_dtype),
        grid_spec=pltpu.PrefetchScalarGridSpec(
            num_scalar_prefetch=0,
            grid=(n, r),
            in_specs=[
                # Current row tile.
                pl.BlockSpec((1, th, w, c), lambda nb, rb: (nb, rb, 0, 0)),
                # 1-row halos with clamped row index (zero-masked in-kernel at borders).
                pl.BlockSpec((1, 1, w, c),
                             lambda nb, rb: (nb, jnp.maximum(rb * th - 1, 0), 0, 0)),
                pl.BlockSpec((1, 1, w, c),
                             lambda nb, rb: (nb, jnp.minimum(rb * th + th, h - 1), 0, 0)),
                pl.BlockSpec((2, 6 * c, 2 * c), lambda nb, rb: (0, 0, 0)),
                pl.BlockSpec((1, 2 * c), lambda nb, rb: (0, 0)),
            ],
            out_specs=pl.BlockSpec((1, th, 2, w, 2 * c),
                                   lambda nb, rb: (nb, rb, 0, 0, 0)),
            scratch_shapes=[pltpu.VMEM((th + 2, w + 2, c), compute_dtype)],
        ),
        compiler_params=pltpu.CompilerParams(
            dimension_semantics=("parallel", "parallel"),
            vmem_limit_bytes=int(vmem_limit_bytes),
        ),
        cost_estimate=cost,
    )(x_nhwc, x_nhwc, x_nhwc, w6, b2)

    # Phase interleave is a free row-major reshape: (N,H,2,W,2C) -> (N,2H,2W,C).
    return out_phase.reshape(n, 2 * h, 2 * w, c)


def upsample_forward(x_nchw, weight_iohw, bias, t=None, **kwargs):
    """Equivalent of Upsample.forward(x, t) on NCHW tensors (t is ignored)."""
    del t  # unused, exactly as in the PyTorch module
    # TODO(synk): keep the surrounding model in NHWC to drop these two transposes
    # (each is a full HBM pass; the NHWC entry point above has none).
    x_nhwc = jnp.transpose(x_nchw, (0, 2, 3, 1))
    y_nhwc = upsample_forward_nhwc(x_nhwc, weight_iohw, bias, **kwargs)
    return jnp.transpose(y_nhwc, (0, 3, 1, 2))


def _reference_conv_transpose(x_nchw, weight_iohw, bias):
    """Pure-JAX reference: ConvTranspose2d(k=4, s=2, p=1) via dilated conv."""
    w_oihw = jnp.transpose(weight_iohw, (1, 0, 2, 3))[:, :, ::-1, ::-1]
    y = jax.lax.conv_general_dilated(
        x_nchw, w_oihw,
        window_strides=(1, 1),
        padding=((2, 2), (2, 2)),
        lhs_dilation=(2, 2),
        dimension_numbers=("NCHW", "OIHW", "NCHW"),
        precision=jax.lax.Precision.HIGHEST,
    )
    return y + bias.reshape(1, -1, 1, 1)


if __name__ == "__main__":
    key = jax.random.PRNGKey(0)
    kx, kw_, kb = jax.random.split(key, 3)

    # Small, module-consistent shapes: batch=2, channels=4, spatial=16.
    N, C, H, W = 2, 4, 16, 16
    x = jax.random.normal(kx, (N, C, H, W), dtype=jnp.float32)

    # Deterministic ConvTranspose2d(C, C, 4, 4) params (PyTorch-style uniform bound).
    bound = 1.0 / math.sqrt(C * 4 * 4)
    weight = jax.random.uniform(kw_, (C, C, 4, 4), jnp.float32, -bound, bound)
    bias = jax.random.uniform(kb, (C,), jnp.float32, -bound, bound)

    t_dummy = jnp.zeros((N,), jnp.float32)  # ignored, as in the PyTorch forward

    # tile_rows=8 -> 2 row tiles per image: exercises both the real-halo path
    # (interior tile boundary) and the zero-masked image border path.
    y = upsample_forward(x, weight, bias, t_dummy, tile_rows=8)
    y = jax.block_until_ready(y)

    # Compare against the reference on the same bf16-rounded operands the kernel
    # feeds the MXU (f32 accumulation in both paths).
    x_q = x.astype(jnp.bfloat16).astype(jnp.float32)
    w_q = weight.astype(jnp.bfloat16).astype(jnp.float32)
    y_ref = _reference_conv_transpose(x_q, w_q, bias)

    assert y.shape == (N, C, 2 * H, 2 * W), y.shape
    assert jnp.allclose(y, y_ref, atol=2e-3, rtol=2e-3), (
        float(jnp.max(jnp.abs(y - y_ref))))

    print("KERNEL_OK")
</pallas_src>

<mosaic_0001>
module attributes {stable_mosaic.version = 11 : i64} {
  func.func @_upsample_convT_kernel(%arg0: i32, %arg1: i32, %arg2: memref<1x8x16x4xf32, #tpu.memory_space<vmem>>, %arg3: memref<1x1x16x4xf32, #tpu.memory_space<vmem>>, %arg4: memref<1x1x16x4xf32, #tpu.memory_space<vmem>>, %arg5: memref<2x24x8xbf16, #tpu.memory_space<vmem>>, %arg6: memref<1x8xf32, #tpu.memory_space<vmem>>, %arg7: memref<1x8x2x16x8xf32, #tpu.memory_space<vmem>>, %arg8: memref<10x18x4xbf16, #tpu.memory_space<vmem>>) attributes {dimension_semantics = [#tpu.dimension_semantics<parallel>, #tpu.dimension_semantics<parallel>], iteration_bounds = array<i64: 2, 2>, scalar_prefetch = 0 : i64, scratch_operands = 1 : i64, tpu.core_type = #tpu.core_type<tc>, window_params = [{transform_indices = @transform_0, window_bounds = array<i64: 1, 8, 16, 4>}, {transform_indices = @transform_1, window_bounds = array<i64: 1, 1, 16, 4>}, {transform_indices = @transform_2, window_bounds = array<i64: 1, 1, 16, 4>}, {pipeline_mode = #tpu.pipeline_mode<synchronous>, transform_indices = @transform_3, window_bounds = array<i64: 2, 24, 8>}, {pipeline_mode = #tpu.pipeline_mode<synchronous>, transform_indices = @transform_4, window_bounds = array<i64: 1, 8>}, {transform_indices = @transform_5, window_bounds = array<i64: 1, 8, 2, 16, 8>}]} {
    %cst = arith.constant 0.000000e+00 : bf16
    %0 = vector.broadcast %cst : bf16 to vector<10x1x4xbf16>
    %c0 = arith.constant 0 : index
    %c0_0 = arith.constant 0 : index
    %c0_1 = arith.constant 0 : index
    %1 = vector.load %arg8[%c0, %c0_0, %c0_1] : memref<10x18x4xbf16, #tpu.memory_space<vmem>>, vector<10x1x4xbf16>
    tpu.vector_store %arg8[%c0, %c0_0, %c0_1], %0 {strides = array<i32>} : memref<10x18x4xbf16, #tpu.memory_space<vmem>>, vector<10x1x4xbf16>,
    %c0_2 = arith.constant 0 : index
    %c17 = arith.constant 17 : index
    %c0_3 = arith.constant 0 : index
    %2 = vector.load %arg8[%c0_2, %c17, %c0_3] : memref<10x18x4xbf16, #tpu.memory_space<vmem>>, vector<10x1x4xbf16>
    tpu.vector_store %arg8[%c0_2, %c17, %c0_3], %0 {strides = array<i32>} : memref<10x18x4xbf16, #tpu.memory_space<vmem>>, vector<10x1x4xbf16>,
    %c0_4 = arith.constant 0 : index
    %c0_5 = arith.constant 0 : index
    %c0_6 = arith.constant 0 : index
    %c0_7 = arith.constant 0 : index
    %3 = vector.load %arg2[%c0_4, %c0_5, %c0_6, %c0_7] : memref<1x8x16x4xf32, #tpu.memory_space<vmem>>, vector<1x8x16x4xf32>
    %4 = vector.shape_cast %3 : vector<1x8x16x4xf32> to vector<8x16x4xf32>
    %5 = arith.truncf %4 : vector<8x16x4xf32> to vector<8x16x4xbf16>
    %c1 = arith.constant 1 : index
    %c1_8 = arith.constant 1 : index
    %c0_9 = arith.constant 0 : index
    %6 = vector.load %arg8[%c1, %c1_8, %c0_9] : memref<10x18x4xbf16, #tpu.memory_space<vmem>>, vector<8x16x4xbf16>
    tpu.vector_store %arg8[%c1, %c1_8, %c0_9], %5 {strides = array<i32>} : memref<10x18x4xbf16, #tpu.memory_space<vmem>>, vector<8x16x4xbf16>,
    %c0_i32 = arith.constant 0 : i32
    %7 = arith.cmpi sgt, %arg1, %c0_i32 : i32
    %c0_10 = arith.constant 0 : index
    %c0_11 = arith.constant 0 : index
    %c0_12 = arith.constant 0 : index
    %c0_13 = arith.constant 0 : index
    %8 = vector.load %arg3[%c0_10, %c0_11, %c0_12, %c0_13] : memref<1x1x16x4xf32, #tpu.memory_space<vmem>>, vector<1x1x16x4xf32>
    %9 = vector.shape_cast %8 : vector<1x1x16x4xf32> to vector<1x16x4xf32>
    %cst_14 = arith.constant 0.000000e+00 : f32
    %10 = vector.broadcast %cst_14 : f32 to vector<1x16x4xf32>
    %11 = arith.select %7, %9, %10 : vector<1x16x4xf32>
    %12 = arith.truncf %11 : vector<1x16x4xf32> to vector<1x16x4xbf16>
    %c1_i32 = arith.constant 1 : i32
    %13 = arith.cmpi slt, %arg1, %c1_i32 : i32
    %c0_15 = arith.constant 0 : index
    %c0_16 = arith.constant 0 : index
    %c0_17 = arith.constant 0 : index
    %c0_18 = arith.constant 0 : index
    %14 = vector.load %arg4[%c0_15, %c0_16, %c0_17, %c0_18] : memref<1x1x16x4xf32, #tpu.memory_space<vmem>>, vector<1x1x16x4xf32>
    %15 = vector.shape_cast %14 : vector<1x1x16x4xf32> to vector<1x16x4xf32>
    %cst_19 = arith.constant 0.000000e+00 : f32
    %16 = vector.broadcast %cst_19 : f32 to vector<1x16x4xf32>
    %17 = arith.select %13, %15, %16 : vector<1x16x4xf32>
    %18 = arith.truncf %17 : vector<1x16x4xf32> to vector<1x16x4xbf16>
    %c0_20 = arith.constant 0 : index
    %c1_21 = arith.constant 1 : index
    %c0_22 = arith.constant 0 : index
    %19 = vector.load %arg8[%c0_20, %c1_21, %c0_22] : memref<10x18x4xbf16, #tpu.memory_space<vmem>>, vector<1x16x4xbf16>
    tpu.vector_store %arg8[%c0_20, %c1_21, %c0_22], %12 {strides = array<i32>} : memref<10x18x4xbf16, #tpu.memory_space<vmem>>, vector<1x16x4xbf16>,
    %c9 = arith.constant 9 : index
    %c1_23 = arith.constant 1 : index
    %c0_24 = arith.constant 0 : index
    %20 = vector.load %arg8[%c9, %c1_23, %c0_24] : memref<10x18x4xbf16, #tpu.memory_space<vmem>>, vector<1x16x4xbf16>
    tpu.vector_store %arg8[%c9, %c1_23, %c0_24], %18 {strides = array<i32>} : memref<10x18x4xbf16, #tpu.memory_space<vmem>>, vector<1x16x4xbf16>,
    %c0_25 = arith.constant 0 : index
    %c0_26 = arith.constant 0 : index
    %21 = vector.load %arg6[%c0_25, %c0_26] : memref<1x8xf32, #tpu.memory_space<vmem>>, vector<1x8xf32>
    %22 = vector.shape_cast %21 : vector<1x8xf32> to vector<1x8xf32>
    %23 = vector.broadcast %22 : vector<1x8xf32> to vector<128x8xf32>
    %c0_27 = arith.constant 0 : index
    %c0_28 = arith.constant 0 : index
    %c0_29 = arith.constant 0 : index
    %24 = vector.load %arg8[%c0_27, %c0_28, %c0_29] : memref<10x18x4xbf16, #tpu.memory_space<vmem>>, vector<8x16x4xbf16>
    %c0_30 = arith.constant 0 : index
    %c1_31 = arith.constant 1 : index
    %c0_32 = arith.constant 0 : index
    %25 = vector.load %arg8[%c0_30, %c1_31, %c0_32] : memref<10x18x4xbf16, #tpu.memory_space<vmem>>, vector<8x16x4xbf16>
    %c0_33 = arith.constant 0 : index
    %c2 = arith.constant 2 : index
    %c0_34 = arith.constant 0 : index
    %26 = vector.load %arg8[%c0_33, %c2, %c0_34] : memref<10x18x4xbf16, #tpu.memory_space<vmem>>, vector<8x16x4xbf16>
    %c1_35 = arith.constant 1 : index
    %c0_36 = arith.constant 0 : index
    %c0_37 = arith.constant 0 : index
    %27 = vector.load %arg8[%c1_35, %c0_36, %c0_37] : memref<10x18x4xbf16, #tpu.memory_space<vmem>>, vector<8x16x4xbf16>
    %c1_38 = arith.constant 1 : index
    %c1_39 = arith.constant 1 : index
    %c0_40 = arith.constant 0 : index
    %28 = vector.load %arg8[%c1_38, %c1_39, %c0_40] : memref<10x18x4xbf16, #tpu.memory_space<vmem>>, vector<8x16x4xbf16>
    %c1_41 = arith.constant 1 : index
    %c2_42 = arith.constant 2 : index
    %c0_43 = arith.constant 0 : index
    %29 = vector.load %arg8[%c1_41, %c2_42, %c0_43] : memref<10x18x4xbf16, #tpu.memory_space<vmem>>, vector<8x16x4xbf16>
    %30 = tpu.concatenate %24, %25, %26, %27, %28, %29 in 2 : vector<8x16x4xbf16>, vector<8x16x4xbf16>, vector<8x16x4xbf16>, vector<8x16x4xbf16>, vector<8x16x4xbf16>, vector<8x16x4xbf16> -> vector<8x16x24xbf16>
    %31 = vector.shape_cast %30 : vector<8x16x24xbf16> to vector<128x24xbf16>
    %c0_44 = arith.constant 0 : index
    %c0_45 = arith.constant 0 : index
    %c0_46 = arith.constant 0 : index
    %32 = vector.load %arg5[%c0_44, %c0_45, %c0_46] : memref<2x24x8xbf16, #tpu.memory_space<vmem>>, vector<1x24x8xbf16>
    %33 = vector.shape_cast %32 : vector<1x24x8xbf16> to vector<24x8xbf16>
    %cst_47 = arith.constant dense<0.000000e+00> : vector<128x8xf32>
    %34 = tpu.matmul %31, %33, %cst_47 {dimension_numbers = #tpu.dot_dimension_numbers<[1], [0], [0], [1], [0, 0, 1, 1], [], []>} : vector<128x24xbf16>, vector<24x8xbf16>, vector<128x8xf32> -> vector<128x8xf32>
    %35 = arith.addf %34, %23 : vector<128x8xf32>
    %36 = vector.shape_cast %35 : vector<128x8xf32> to vector<8x16x8xf32>
    %c0_48 = arith.constant 0 : index
    %c0_49 = arith.constant 0 : index
    %c0_50 = arith.constant 0 : index
    %c0_51 = arith.constant 0 : index
    %c0_52 = arith.constant 0 : index
    %37 = vector.load %arg7[%c0_48, %c0_49, %c0_50, %c0_51, %c0_52] : memref<1x8x2x16x8xf32, #tpu.memory_space<vmem>>, vector<1x8x1x16x8xf32>
    %38 = vector.shape_cast %37 : vector<1x8x1x16x8xf32> to vector<8x16x8xf32>
    %39 = vector.shape_cast %36 : vector<8x16x8xf32> to vector<1x8x1x16x8xf32>
    tpu.vector_store %arg7[%c0_48, %c0_49, %c0_50, %c0_51, %c0_52], %39 {strides = array<i32>} : memref<1x8x2x16x8xf32, #tpu.memory_space<vmem>>, vector<1x8x1x16x8xf32>,
    %c1_53 = arith.constant 1 : index
    %c0_54 = arith.constant 0 : index
    %c0_55 = arith.constant 0 : index
    %40 = vector.load %arg8[%c1_53, %c0_54, %c0_55] : memref<10x18x4xbf16, #tpu.memory_space<vmem>>, vector<8x16x4xbf16>
    %c1_56 = arith.constant 1 : index
    %c1_57 = arith.constant 1 : index
    %c0_58 = arith.constant 0 : index
    %41 = vector.load %arg8[%c1_56, %c1_57, %c0_58] : memref<10x18x4xbf16, #tpu.memory_space<vmem>>, vector<8x16x4xbf16>
    %c1_59 = arith.constant 1 : index
    %c2_60 = arith.constant 2 : index
    %c0_61 = arith.constant 0 : index
    %42 = vector.load %arg8[%c1_59, %c2_60, %c0_61] : memref<10x18x4xbf16, #tpu.memory_space<vmem>>, vector<8x16x4xbf16>
    %c2_62 = arith.constant 2 : index
    %c0_63 = arith.constant 0 : index
    %c0_64 = arith.constant 0 : index
    %43 = vector.load %arg8[%c2_62, %c0_63, %c0_64] : memref<10x18x4xbf16, #tpu.memory_space<vmem>>, vector<8x16x4xbf16>
    %c2_65 = arith.constant 2 : index
    %c1_66 = arith.constant 1 : index
    %c0_67 = arith.constant 0 : index
    %44 = vector.load %arg8[%c2_65, %c1_66, %c0_67] : memref<10x18x4xbf16, #tpu.memory_space<vmem>>, vector<8x16x4xbf16>
    %c2_68 = arith.constant 2 : index
    %c2_69 = arith.constant 2 : index
    %c0_70 = arith.constant 0 : index
    %45 = vector.load %arg8[%c2_68, %c2_69, %c0_70] : memref<10x18x4xbf16, #tpu.memory_space<vmem>>, vector<8x16x4xbf16>
    %46 = tpu.concatenate %40, %41, %42, %43, %44, %45 in 2 : vector<8x16x4xbf16>, vector<8x16x4xbf16>, vector<8x16x4xbf16>, vector<8x16x4xbf16>, vector<8x16x4xbf16>, vector<8x16x4xbf16> -> vector<8x16x24xbf16>
    %47 = vector.shape_cast %46 : vector<8x16x24xbf16> to vector<128x24xbf16>
    %c1_71 = arith.constant 1 : index
    %c0_72 = arith.constant 0 : index
    %c0_73 = arith.constant 0 : index
    %48 = vector.load %arg5[%c1_71, %c0_72, %c0_73] : memref<2x24x8xbf16, #tpu.memory_space<vmem>>, vector<1x24x8xbf16>
    %49 = vector.shape_cast %48 : vector<1x24x8xbf16> to vector<24x8xbf16>
    %cst_74 = arith.constant dense<0.000000e+00> : vector<128x8xf32>
    %50 = tpu.matmul %47, %49, %cst_74 {dimension_numbers = #tpu.dot_dimension_numbers<[1], [0], [0], [1], [0, 0, 1, 1], [], []>} : vector<128x24xbf16>, vector<24x8xbf16>, vector<128x8xf32> -> vector<128x8xf32>
    %51 = arith.addf %50, %23 : vector<128x8xf32>
    %52 = vector.shape_cast %51 : vector<128x8xf32> to vector<8x16x8xf32>
    %c0_75 = arith.constant 0 : index
    %c0_76 = arith.constant 0 : index
    %c1_77 = arith.constant 1 : index
    %c0_78 = arith.constant 0 : index
    %c0_79 = arith.constant 0 : index
    %53 = vector.load %arg7[%c0_75, %c0_76, %c1_77, %c0_78, %c0_79] : memref<1x8x2x16x8xf32, #tpu.memory_space<vmem>>, vector<1x8x1x16x8xf32>
    %54 = vector.shape_cast %53 : vector<1x8x1x16x8xf32> to vector<8x16x8xf32>
    %55 = vector.shape_cast %52 : vector<8x16x8xf32> to vector<1x8x1x16x8xf32>
    tpu.vector_store %arg7[%c0_75, %c0_76, %c1_77, %c0_78, %c0_79], %55 {strides = array<i32>} : memref<1x8x2x16x8xf32, #tpu.memory_space<vmem>>, vector<1x8x1x16x8xf32>,
    return
  }
  func.func @transform_0(%arg0: i32, %arg1: i32) -> (i32, i32, i32, i32) {
    %c0_i32 = arith.constant 0 : i32
    %c0_i32_0 = arith.constant 0 : i32
    %c0_i32_1 = arith.constant 0 : i32
    return %arg0, %arg1, %c0_i32, %c0_i32_0 : i32, i32, i32, i32
  }
  func.func @transform_1(%arg0: i32, %arg1: i32) -> (i32, i32, i32, i32) {
    %c8_i32 = arith.constant 8 : i32
    %0 = arith.muli %arg1, %c8_i32 : i32
    %c1_i32 = arith.constant 1 : i32
    %1 = arith.subi %0, %c1_i32 : i32
    %c0_i32 = arith.constant 0 : i32
    %2 = arith.maxsi %1, %c0_i32 : i32
    %c0_i32_0 = arith.constant 0 : i32
    %c0_i32_1 = arith.constant 0 : i32
    %c0_i32_2 = arith.constant 0 : i32
    return %arg0, %2, %c0_i32_0, %c0_i32_1 : i32, i32, i32, i32
  }
  func.func @transform_2(%arg0: i32, %arg1: i32) -> (i32, i32, i32, i32) {
    %c8_i32 = arith.constant 8 : i32
    %0 = arith.muli %arg1, %c8_i32 : i32
    %c8_i32_0 = arith.constant 8 : i32
    %1 = arith.addi %0, %c8_i32_0 : i32
    %c15_i32 = arith.constant 15 : i32
    %2 = arith.minsi %1, %c15_i32 : i32
    %c0_i32 = arith.constant 0 : i32
    %c0_i32_1 = arith.constant 0 : i32
    %c0_i32_2 = arith.constant 0 : i32
    return %arg0, %2, %c0_i32, %c0_i32_1 : i32, i32, i32, i32
  }
  func.func @transform_3(%arg0: i32, %arg1: i32) -> (i32, i32, i32) {
    %c0_i32 = arith.constant 0 : i32
    %c0_i32_0 = arith.constant 0 : i32
    %c0_i32_1 = arith.constant 0 : i32
    %c0_i32_2 = arith.constant 0 : i32
    return %c0_i32, %c0_i32_0, %c0_i32_1 : i32, i32, i32
  }
  func.func @transform_4(%arg0: i32, %arg1: i32) -> (i32, i32) {
    %c0_i32 = arith.constant 0 : i32
    %c0_i32_0 = arith.constant 0 : i32
    %c0_i32_1 = arith.constant 0 : i32
    return %c0_i32, %c0_i32_0 : i32, i32
  }
  func.func @transform_5(%arg0: i32, %arg1: i32) -> (i32, i32, i32, i32, i32) {
    %c0_i32 = arith.constant 0 : i32
    %c0_i32_0 = arith.constant 0 : i32
    %c0_i32_1 = arith.constant 0 : i32
    %c0_i32_2 = arith.constant 0 : i32
    return %arg0, %arg1, %c0_i32, %c0_i32_0, %c0_i32_1 : i32, i32, i32, i32, i32
  }
}

</mosaic_0001>

<llo_original>
// kernel: tpu_custom_call.1
$region0: #{tpu_custom_call.1}
  #allocation0 [shape = 'u32[]', space=smem, size = 0x4, offset = 0x4, fixed_abs, tag = 'smem constant byte address 0x4 - core index']
  #allocation1 [shape = 'u32[144,128]{1,0:T(1,128)}', space=vmem, size = 0x12000, scoped, tag = 'internal scratch']
  #allocation2 [shape = 'bf16[10,18,4]{2,1,0:T(8,128)(2,1)}', space=vmem, size = 0xf000, scoped, tag = 'scratch operand']
  %s0 = inlined_call_operand.vmem [shape: f32[2,16,16,4], index: 0, kind: input, shape index: {}]
  %s1 = inlined_call_operand.vmem [shape: f32[2,16,16,4], index: 1, kind: input, shape index: {}]
  %s2 = inlined_call_operand.vmem [shape: f32[2,16,16,4], index: 2, kind: input, shape index: {}]
  %s3 = inlined_call_operand.vmem [shape: bf16[2,24,8], index: 3, kind: input, shape index: {}]
  %s4 = inlined_call_operand.vmem [shape: f32[1,8], index: 4, kind: input, shape index: {}]
  %s5 = inlined_call_operand.vmem [shape: f32[2,16,2,16,8], index: 5, kind: output, shape index: {}]
  %s6 = sld [smem:[#allocation0]]
  $region53: #{tpu_custom_call.1} parent=0
    _
  %s8 = ssub.s32 1, %s6
  %s9 = scalar_select 0, %s8, %s6
  loop: start=0, step=1, limit=6
  $region2: #{tpu_custom_call.1} parent=0 // loop_pre_header
    _
  $region3: #{tpu_custom_call.1} parent=0 // loop_header
    %s11 = sphi 0, %s15
    %p12 = scmp.ge.s32.totalorder %s11, 6
    %s18 = sphi 0, %s30
    %s19 = sphi 0, %s26
    %s20 = sphi 0, %s18
    %s21 = sphi 0, %s19
    %s22 = sphi 0, %s20
    %s23 = sphi 0, %s21
    %s35 = sphi 0, %s37
    %s38 = sphi 0, %s35
    %s39 = sphi 0, %s38
    %s55 = sphi 0, %s39
    %s71 = sphi 0, %s73
    %s74 = sphi 0, %s71
    %s75 = sphi 0, %s74
    %s91 = sphi 0, %s75
    %s107 = sphi 0, %s109
    %s110 = sphi 0, %s107
    %s111 = sphi 0, %s110
    %s127 = sphi 0, %s111
    %s131 = sphi 0, %s131
    %s133 = sphi 0, %s131
    %s134 = sphi 0, %s133
    %s148 = sphi 0, %s134
    %s152 = sphi 0, %s152
    %s154 = sphi 0, %s152
    %s155 = sphi 0, %s154
    %s169 = sphi 0, %s155
    %s177 = sphi 0, %s179
    %s180 = sphi 0, %s177
    %s181 = sphi 0, %s180
    %s197 = sphi 0, %s181
  $region4: #{tpu_custom_call.1} parent=0 // loop_header_branch
    %14 = sbr.rel (%p12) target = $region8
  $region5: #{tpu_custom_call.1} parent=0 // loop_body
    %s16 = ssub.s32 %s11, 1
    %s17 = ssub.s32 %s11, 2
    %s24 = sadd.s32 1, %s19
    %p25 = scmp.ge.s32.totalorder %s24, 2
    %s26 = scalar_select %p25, 0, %s24
    %s27 = sadd.s32 1, %s18
    %s28 = scalar_select %p25, %s27, %s18
    %p29 = scmp.ge.s32.totalorder %s28, 2
    %s30 = scalar_select %p29, 0, %s28
    %s31 = ssub.s32 %s18, %s30
    %s32 = ssub.s32 %s19, %s26
    %s33 = sor.u32 %s31, %s32
    %p34 = scmp.eq.s32.totalorder %s33, 0
    %s36 = sadd.s32 %s35, 1
    %s37 = scalar_select %p34, %s35, %s36
    %p40 = pneg %p34
    %p41 = scmp.eq.s32.totalorder %s11, 3
    %p42 = por %p40, %p41
    %p43 = scmp.ne.s32.totalorder %s35, %s38
    %p44 = scmp.eq.s32.totalorder %s11, 0
    %p45 = por %p43, %p44
    %p46 = scmp.ne.s32.totalorder %s35, %s38
    %p47 = scmp.eq.s32.totalorder %s16, 3
    %p48 = por %p46, %p47
    %p49 = scmp.ne.s32.totalorder %s38, %s39
    %p50 = scmp.eq.s32.totalorder %s16, 0
    %p51 = por %p49, %p50
    %p52 = scmp.ne.s32.totalorder %s38, %s39
    %p53 = scmp.eq.s32.totalorder %s17, 3
    %p54 = por %p52, %p53
    %p56 = scmp.ne.s32.totalorder %s39, %s55
    %p57 = scmp.eq.s32.totalorder %s17, 0
    %p58 = por %p56, %p57
    %s59 = smul.u32 %s19, 8
    %s60 = ssub.s32 %s59, 1
    %p61 = scmp.gt.s32.totalorder %s60, 0
    %s62 = scalar_select %p61, %s60, 0
    %s63 = smul.u32 %s26, 8
    %s64 = ssub.s32 %s63, 1
    %p65 = scmp.gt.s32.totalorder %s64, 0
    %s66 = scalar_select %p65, %s64, 0
    %s67 = ssub.s32 %s18, %s30
    %s68 = ssub.s32 %s62, %s66
    %s69 = sor.u32 %s67, %s68
    %p70 = scmp.eq.s32.totalorder %s69, 0
    %s72 = sadd.s32 %s71, 1
    %s73 = scalar_select %p70, %s71, %s72
    %p76 = pneg %p70
    %p77 = scmp.eq.s32.totalorder %s11, 3
    %p78 = por %p76, %p77
    %p79 = scmp.ne.s32.totalorder %s71, %s74
    %p80 = scmp.eq.s32.totalorder %s11, 0
    %p81 = por %p79, %p80
    %p82 = scmp.ne.s32.totalorder %s71, %s74
    %p83 = scmp.eq.s32.totalorder %s16, 3
    %p84 = por %p82, %p83
    %p85 = scmp.ne.s32.totalorder %s74, %s75
    %p86 = scmp.eq.s32.totalorder %s16, 0
    %p87 = por %p85, %p86
    %p88 = scmp.ne.s32.totalorder %s74, %s75
    %p89 = scmp.eq.s32.totalorder %s17, 3
    %p90 = por %p88, %p89
    %p92 = scmp.ne.s32.totalorder %s75, %s91
    %p93 = scmp.eq.s32.totalorder %s17, 0
    %p94 = por %p92, %p93
    %s95 = smul.u32 %s19, 8
    %s96 = sadd.s32 %s95, 8
    %p97 = scmp.lt.s32.totalorder %s96, 15
    %s98 = scalar_select %p97, %s96, 15
    %s99 = smul.u32 %s26, 8
    %s100 = sadd.s32 %s99, 8
    %p101 = scmp.lt.s32.totalorder %s100, 15
    %s102 = scalar_select %p101, %s100, 15
    %s103 = ssub.s32 %s18, %s30
    %s104 = ssub.s32 %s98, %s102
    %s105 = sor.u32 %s103, %s104
    %p106 = scmp.eq.s32.totalorder %s105, 0
    %s108 = sadd.s32 %s107, 1
    %s109 = scalar_select %p106, %s107, %s108
    %p112 = pneg %p106
    %p113 = scmp.eq.s32.totalorder %s11, 3
    %p114 = por %p112, %p113
    %p115 = scmp.ne.s32.totalorder %s107, %s110
    %p116 = scmp.eq.s32.totalorder %s11, 0
    %p117 = por %p115, %p116
    %p118 = scmp.ne.s32.totalorder %s107, %s110
    %p119 = scmp.eq.s32.totalorder %s16, 3
    %p120 = por %p118, %p119
    %p121 = scmp.ne.s32.totalorder %s110, %s111
    %p122 = scmp.eq.s32.totalorder %s16, 0
    %p123 = por %p121, %p122
    %p124 = scmp.ne.s32.totalorder %s110, %s111
    %p125 = scmp.eq.s32.totalorder %s17, 3
    %p126 = por %p124, %p125
    %p128 = scmp.ne.s32.totalorder %s111, %s127
    %p129 = scmp.eq.s32.totalorder %s17, 0
    %p130 = por %p128, %p129
    %s132 = sadd.s32 %s131, 1
    %p135 = scmp.eq.s32.totalorder %s11, 3
    %p136 = scmp.ne.s32.totalorder %s131, %s133
    %p137 = scmp.eq.s32.totalorder %s11, 0
    %p138 = por %p136, %p137
    %p139 = scmp.ne.s32.totalorder %s131, %s133
    %p140 = scmp.eq.s32.totalorder %s16, 3
    %p141 = por %p139, %p140
    %p142 = scmp.ne.s32.totalorder %s133, %s134
    %p143 = scmp.eq.s32.totalorder %s16, 0
    %p144 = por %p142, %p143
    %p145 = scmp.ne.s32.totalorder %s133, %s134
    %p146 = scmp.eq.s32.totalorder %s17, 3
    %p147 = por %p145, %p146
    %p149 = scmp.ne.s32.totalorder %s134, %s148
    %p150 = scmp.eq.s32.totalorder %s17, 0
    %p151 = por %p149, %p150
    %s153 = sadd.s32 %s152, 1
    %p156 = scmp.eq.s32.totalorder %s11, 3
    %p157 = scmp.ne.s32.totalorder %s152, %s154
    %p158 = scmp.eq.s32.totalorder %s11, 0
    %p159 = por %p157, %p158
    %p160 = scmp.ne.s32.totalorder %s152, %s154
    %p161 = scmp.eq.s32.totalorder %s16, 3
    %p162 = por %p160, %p161
    %p163 = scmp.ne.s32.totalorder %s154, %s155
    %p164 = scmp.eq.s32.totalorder %s16, 0
    %p165 = por %p163, %p164
    %p166 = scmp.ne.s32.totalorder %s154, %s155
    %p167 = scmp.eq.s32.totalorder %s17, 3
    %p168 = por %p166, %p167
    %p170 = scmp.ne.s32.totalorder %s155, %s169
    %p171 = scmp.eq.s32.totalorder %s17, 0
    %p172 = por %p170, %p171
    %s173 = ssub.s32 %s18, %s30
    %s174 = ssub.s32 %s19, %s26
    %s175 = sor.u32 %s173, %s174
    %p176 = scmp.eq.s32.totalorder %s175, 0
    %s178 = sadd.s32 %s177, 1
    %s179 = scalar_select %p176, %s177, %s178
    %p182 = pneg %p176
    %p183 = scmp.eq.s32.totalorder %s11, 3
    %p184 = por %p182, %p183
    %p185 = scmp.ne.s32.totalorder %s177, %s180
    %p186 = scmp.eq.s32.totalorder %s11, 0
    %p187 = por %p185, %p186
    %p188 = scmp.ne.s32.totalorder %s177, %s180
    %p189 = scmp.eq.s32.totalorder %s16, 3
    %p190 = por %p188, %p189
    %p191 = scmp.ne.s32.totalorder %s180, %s181
    %p192 = scmp.eq.s32.totalorder %s16, 0
    %p193 = por %p191, %p192
    %p194 = scmp.ne.s32.totalorder %s180, %s181
    %p195 = scmp.eq.s32.totalorder %s17, 3
    %p196 = por %p194, %p195
    %p198 = scmp.ne.s32.totalorder %s181, %s197
    %p199 = scmp.eq.s32.totalorder %s17, 0
    %p200 = por %p198, %p199
    %p201 = scmp.le.s32.totalorder 1, %s11
    %p202 = scmp.lt.s32.totalorder %s11, 5
    %p203 = pnand %p201, %p202
    %p204 = pneg %p203
    // Predicated region
    $region9: #{tpu_custom_call.1} parent=5 // pred_check
      _
    $region10: #{tpu_custom_call.1} parent=5 // pred_check_branch
      %206 = sbr.rel (%p203) target = $region12
    $region11: #{tpu_custom_call.1} parent=5 // pred_region
      %s207 = ssub.s32 %s11, 1
      // Predicated region
      $region13: #{tpu_custom_call.1} parent=11 // pred_check
        %p208 = pneg %p144
      $region14: #{tpu_custom_call.1} parent=11 // pred_check_branch
        %210 = sbr.rel (%p208) target = $region16
      $region15: #{tpu_custom_call.1} parent=11 // pred_region
        _
      $region16: #{tpu_custom_call.1} parent=11 // pred_fallthru
        _
      // Predicated region
      $region17: #{tpu_custom_call.1} parent=11 // pred_check
        %p211 = pneg %p165
      $region18: #{tpu_custom_call.1} parent=11 // pred_check_branch
        %213 = sbr.rel (%p211) target = $region20
      $region19: #{tpu_custom_call.1} parent=11 // pred_region
        _
      $region20: #{tpu_custom_call.1} parent=11 // pred_fallthru
        _
    $region12: #{tpu_custom_call.1} parent=5 // pred_fallthru
      _
    %p214 = scmp.lt.s32.totalorder %s11, 4
    // Predicated region
    $region21: #{tpu_custom_call.1} parent=5 // pred_check
      %p215 = pneg %p214
    $region22: #{tpu_custom_call.1} parent=5 // pred_check_branch
      %217 = sbr.rel (%p215) target = $region24
    $region23: #{tpu_custom_call.1} parent=5 // pred_region
      // Predicated region
      $region25: #{tpu_custom_call.1} parent=23 // pred_check
        %p218 = pneg %p45
      $region26: #{tpu_custom_call.1} parent=23 // pred_check_branch
        %220 = sbr.rel (%p218) target = $region28
      $region27: #{tpu_custom_call.1} parent=23 // pred_region
        %s221 = smul.u32 8, %s19
        %p222 = scmp.lt.s32.totalorder %s18, 1
        %s223 = scalar_select %p222, %s18, 1
        %p224 = scmp.lt.s32.totalorder %s221, 15
        %s225 = scalar_select %p224, %s221, 15
        %s226 = smul.addr %s225, 2
        %s227 = smul.addr %s223, 32
        %s228 = sadd.s32 %s226, %s227
        %s229 = smul.addr %s228, 8
        %s230 = scalar_lea.vmem %s0, %s229
        %s231 = smul.u32 8, %s19
      $region28: #{tpu_custom_call.1} parent=23 // pred_fallthru
        _
      // Predicated region
      $region29: #{tpu_custom_call.1} parent=23 // pred_check
        %p232 = pneg %p81
      $region30: #{tpu_custom_call.1} parent=23 // pred_check_branch
        %234 = sbr.rel (%p232) target = $region32
      $region31: #{tpu_custom_call.1} parent=23 // pred_region
        %s235 = smul.u32 %s19, 8
        %s236 = ssub.s32 %s235, 1
        %p237 = scmp.gt.s32.totalorder %s236, 0
        %s238 = scalar_select %p237, %s236, 0
        %p239 = scmp.lt.s32.totalorder %s18, 1
        %s240 = scalar_select %p239, %s18, 1
        %p241 = scmp.lt.s32.totalorder %s238, 15
        %s242 = scalar_select %p241, %s238, 15
        %s243 = smul.addr %s242, 2
        %s244 = smul.addr %s240, 32
        %s245 = sadd.s32 %s243, %s244
        %s246 = smul.addr %s245, 8
        %s247 = scalar_lea.vmem %s1, %s246
        %s248 = smul.u32 %s19, 8
        %s249 = ssub.s32 %s248, 1
        %p250 = scmp.gt.s32.totalorder %s249, 0
        %s251 = scalar_select %p250, %s249, 0
      $region32: #{tpu_custom_call.1} parent=23 // pred_fallthru
        _
      // Predicated region
      $region33: #{tpu_custom_call.1} parent=23 // pred_check
        %p252 = pneg %p117
      $region34: #{tpu_custom_call.1} parent=23 // pred_check_branch
        %254 = sbr.rel (%p252) target = $region36
      $region35: #{tpu_custom_call.1} parent=23 // pred_region
        %s255 = smul.u32 %s19, 8
        %s256 = sadd.s32 %s255, 8
        %p257 = scmp.lt.s32.totalorder %s256, 15
        %s258 = scalar_select %p257, %s256, 15
        %p259 = scmp.lt.s32.totalorder %s18, 1
        %s260 = scalar_select %p259, %s18, 1
        %p261 = scmp.lt.s32.totalorder %s258, 15
        %s262 = scalar_select %p261, %s258, 15
        %s263 = smul.addr %s262, 2
        %s264 = smul.addr %s260, 32
        %s265 = sadd.s32 %s263, %s264
        %s266 = smul.addr %s265, 8
        %s267 = scalar_lea.vmem %s2, %s266
        %s268 = smul.u32 %s19, 8
        %s269 = sadd.s32 %s268, 8
        %p270 = scmp.lt.s32.totalorder %s269, 15
        %s271 = scalar_select %p270, %s269, 15
      $region36: #{tpu_custom_call.1} parent=23 // pred_fallthru
        _
    $region24: #{tpu_custom_call.1} parent=5 // pred_fallthru
      _
    %p272 = scmp.le.s32.totalorder 1, %s11
    %p273 = scmp.lt.s32.totalorder %s11, 5
    %p274 = pnand %p272, %p273
    %p275 = pneg %p274
    // Predicated region
    $region37: #{tpu_custom_call.1} parent=5 // pred_check
      _
    $region38: #{tpu_custom_call.1} parent=5 // pred_check_branch
      %277 = sbr.rel (%p274) target = $region40
    $region39: #{tpu_custom_call.1} parent=5 // pred_region
      %s278 = ssub.s32 %s11, 1
      %s279 = smul.u32 8, %s21
      %p280 = scmp.lt.s32.totalorder %s20, 1
      %s281 = scalar_select %p280, %s20, 1
      %p282 = scmp.lt.s32.totalorder %s279, 15
      %s283 = scalar_select %p282, %s279, 15
      %s284 = smul.addr %s283, 2
      %s285 = smul.addr %s281, 32
      %s286 = sadd.s32 %s284, %s285
      %s287 = smul.addr %s286, 8
      %s288 = scalar_lea.vmem %s0, %s287
      %p289 = pneg %p51
      %p290 = pneg %p48
      %s291 = smul.u32 %s21, 8
      %s292 = ssub.s32 %s291, 1
      %p293 = scmp.gt.s32.totalorder %s292, 0
      %s294 = scalar_select %p293, %s292, 0
      %p295 = scmp.lt.s32.totalorder %s20, 1
      %s296 = scalar_select %p295, %s20, 1
      %p297 = scmp.lt.s32.totalorder %s294, 15
      %s298 = scalar_select %p297, %s294, 15
      %s299 = smul.addr %s298, 2
      %s300 = smul.addr %s296, 32
      %s301 = sadd.s32 %s299, %s300
      %s302 = smul.addr %s301, 8
      %s303 = scalar_lea.vmem %s1, %s302
      %p304 = pneg %p87
      %p305 = pneg %p84
      %s306 = smul.u32 %s21, 8
      %s307 = sadd.s32 %s306, 8
      %p308 = scmp.lt.s32.totalorder %s307, 15
      %s309 = scalar_select %p308, %s307, 15
      %p310 = scmp.lt.s32.totalorder %s20, 1
      %s311 = scalar_select %p310, %s20, 1
      %p312 = scmp.lt.s32.totalorder %s309, 15
      %s313 = scalar_select %p312, %s309, 15
      %s314 = smul.addr %s313, 2
      %s315 = smul.addr %s311, 32
      %s316 = sadd.s32 %s314, %s315
      %s317 = smul.addr %s316, 8
      %s318 = scalar_lea.vmem %s2, %s317
      %p319 = pneg %p123
      %p320 = pneg %p120
      %p321 = pneg %p144
      %p322 = pneg %p141
      %p323 = pneg %p165
      %p324 = pneg %p162
      %p325 = pneg %p193
      %p326 = pneg %p190
      %s327 = smul.u32 8, %s21
      %p328 = scmp.lt.s32.totalorder %s20, 1
      %s329 = scalar_select %p328, %s20, 1
      %p330 = scmp.lt.s32.totalorder %s327, 15
      %s331 = scalar_select %p330, %s327, 15
      %s332 = smul.addr %s331, 4
      %s333 = smul.addr %s329, 64
      %s334 = sadd.s32 %s332, %s333
      %s335 = smul.addr %s334, 8
      %s336 = scalar_lea.vmem %s5, %s335
      %s337 = smul.u32 8, %s21
      %p338 = scmp.lt.s32.totalorder %s20, 1
      %s339 = scalar_select %p338, %s20, 1
      %p340 = scmp.lt.s32.totalorder %s337, 15
      %s341 = scalar_select %p340, %s337, 15
      %s342 = smul.addr %s341, 2
      %s343 = smul.addr %s339, 32
      %s344 = sadd.s32 %s342, %s343
      %s345 = smul.addr %s344, 8
      %s346 = scalar_lea.vmem %s0, %s345
      %s347 = smul.u32 8, %s21
      %s348 = smul.u32 %s21, 8
      %s349 = ssub.s32 %s348, 1
      %p350 = scmp.gt.s32.totalorder %s349, 0
      %s351 = scalar_select %p350, %s349, 0
      %p352 = scmp.lt.s32.totalorder %s20, 1
      %s353 = scalar_select %p352, %s20, 1
      %p354 = scmp.lt.s32.totalorder %s351, 15
      %s355 = scalar_select %p354, %s351, 15
      %s356 = smul.addr %s355, 2
      %s357 = smul.addr %s353, 32
      %s358 = sadd.s32 %s356, %s357
      %s359 = smul.addr %s358, 8
      %s360 = scalar_lea.vmem %s1, %s359
      %s361 = smul.u32 %s21, 8
      %s362 = ssub.s32 %s361, 1
      %p363 = scmp.gt.s32.totalorder %s362, 0
      %s364 = scalar_select %p363, %s362, 0
      %s365 = smul.u32 %s21, 8
      %s366 = sadd.s32 %s365, 8
      %p367 = scmp.lt.s32.totalorder %s366, 15
      %s368 = scalar_select %p367, %s366, 15
      %p369 = scmp.lt.s32.totalorder %s20, 1
      %s370 = scalar_select %p369, %s20, 1
      %p371 = scmp.lt.s32.totalorder %s368, 15
      %s372 = scalar_select %p371, %s368, 15
      %s373 = smul.addr %s372, 2
      %s374 = smul.addr %s370, 32
      %s375 = sadd.s32 %s373, %s374
      %s376 = smul.addr %s375, 8
      %s377 = scalar_lea.vmem %s2, %s376
      %s378 = smul.u32 %s21, 8
      %s379 = sadd.s32 %s378, 8
      %p380 = scmp.lt.s32.totalorder %s379, 15
      %s381 = scalar_select %p380, %s379, 15
      %s382 = smul.u32 8, %s21
      %p383 = scmp.lt.s32.totalorder %s20, 1
      %s384 = scalar_select %p383, %s20, 1
      %p385 = scmp.lt.s32.totalorder %s382, 15
      %s386 = scalar_select %p385, %s382, 15
      %s387 = smul.addr %s386, 4
      %s388 = smul.addr %s384, 64
      %s389 = sadd.s32 %s387, %s388
      %s390 = smul.addr %s389, 8
      %s391 = scalar_lea.vmem %s5, %s390
      %s392 = smul.u32 8, %s21
      %vm394 = vcmask 24576
      %vm395 = vsmask.f32 256
      %vm396 = vmand %vm394, %vm395
      %v397 = vld [vmem:[#allocation2] sm:$0x1]
      %v398 = vsel %vm396, 0, %v397
      %399 = vst [vmem:[#allocation2] sm:$0x1] %v398
      %v400 = vld [vmem:[#allocation2 + $0xc] sm:$0x1]
      %v401 = vsel %vm396, 0, %v400
      %402 = vst [vmem:[#allocation2 + $0xc] sm:$0x1] %v401
      %v403 = vld [vmem:[#allocation2 + $0x18] sm:$0x1]
      %v404 = vsel %vm396, 0, %v403
      %405 = vst [vmem:[#allocation2 + $0x18] sm:$0x1] %v404
      %v406 = vld [vmem:[#allocation2 + $0x24] sm:$0x1]
      %v407 = vsel %vm396, 0, %v406
      %408 = vst [vmem:[#allocation2 + $0x24] sm:$0x1] %v407
      %v409 = vld [vmem:[#allocation2 + $0x30] sm:$0x1]
      %v410 = vsel %vm396, 0, %v409
      %411 = vst [vmem:[#allocation2 + $0x30] sm:$0x1] %v410
      %v412 = vld [vmem:[#allocation2 + $0x3c] sm:$0x1]
      %v413 = vsel %vm396, 0, %v412
      %414 = vst [vmem:[#allocation2 + $0x3c] sm:$0x1] %v413
      %v415 = vld [vmem:[#allocation2 + $0x48] sm:$0x1]
      %v416 = vsel %vm396, 0, %v415
      %417 = vst [vmem:[#allocation2 + $0x48] sm:$0x1] %v416
      %v418 = vld [vmem:[#allocation2 + $0x54] sm:$0x1]
      %v419 = vsel %vm396, 0, %v418
      %420 = vst [vmem:[#allocation2 + $0x54] sm:$0x1] %v419
      %v421 = vld [vmem:[#allocation2 + $0x60] sm:$0x1]
      %v422 = vsel %vm396, 0, %v421
      %423 = vst [vmem:[#allocation2 + $0x60] sm:$0x1] %v422
      %v424 = vld [vmem:[#allocation2 + $0x6c] sm:$0x1]
      %v425 = vsel %vm396, 0, %v424
      %426 = vst [vmem:[#allocation2 + $0x6c] sm:$0x1] %v425
      %vm427 = vsmask.f32 7938
      %vm428 = vmand %vm394, %vm427
      %v429 = vld [vmem:[#allocation2 + $0x8] sm:$0x1]
      %v430 = vsel %vm428, 0, %v429
      %431 = vst [vmem:[#allocation2 + $0x8] sm:$0x1] %v430
      %v432 = vld [vmem:[#allocation2 + $0x14] sm:$0x1]
      %v433 = vsel %vm428, 0, %v432
      %434 = vst [vmem:[#allocation2 + $0x14] sm:$0x1] %v433
      %v435 = vld [vmem:[#allocation2 + $0x20] sm:$0x1]
      %v436 = vsel %vm428, 0, %v435
      %437 = vst [vmem:[#allocation2 + $0x20] sm:$0x1] %v436
      %v438 = vld [vmem:[#allocation2 + $0x2c] sm:$0x1]
      %v439 = vsel %vm428, 0, %v438
      %440 = vst [vmem:[#allocation2 + $0x2c] sm:$0x1] %v439
      %v441 = vld [vmem:[#allocation2 + $0x38] sm:$0x1]
      %v442 = vsel %vm428, 0, %v441
      %443 = vst [vmem:[#allocation2 + $0x38] sm:$0x1] %v442
      %v444 = vld [vmem:[#allocation2 + $0x44] sm:$0x1]
      %v445 = vsel %vm428, 0, %v444
      %446 = vst [vmem:[#allocation2 + $0x44] sm:$0x1] %v445
      %v447 = vld [vmem:[#allocation2 + $0x50] sm:$0x1]
      %v448 = vsel %vm428, 0, %v447
      %449 = vst [vmem:[#allocation2 + $0x50] sm:$0x1] %v448
      %v450 = vld [vmem:[#allocation2 + $0x5c] sm:$0x1]
      %v451 = vsel %vm428, 0, %v450
      %452 = vst [vmem:[#allocation2 + $0x5c] sm:$0x1] %v451
      %v453 = vld [vmem:[#allocation2 + $0x68] sm:$0x1]
      %v454 = vsel %vm428, 0, %v453
      %455 = vst [vmem:[#allocation2 + $0x68] sm:$0x1] %v454
      %v456 = vld [vmem:[#allocation2 + $0x74] sm:$0x1]
      %v457 = vsel %vm428, 0, %v456
      %458 = vst [vmem:[#allocation2 + $0x74] sm:$0x1] %v457
      %v459 = vld [vmem:[%s346] sm:$0xff]
      %v460 = vld [vmem:[%s346 + $0x8] sm:$0xff]
      %v461 = vld [vmem:[%s346 + $0x10] sm:$0xff]
      %v462 = vld [vmem:[%s346 + $0x18] sm:$0xff]
      %v463 = vld [vmem:[%s346 + $0x20] sm:$0xff]
      %v464 = vld [vmem:[%s346 + $0x28] sm:$0xff]
      %v465 = vld [vmem:[%s346 + $0x30] sm:$0xff]
      %v466 = vld [vmem:[%s346 + $0x38] sm:$0xff]
      %v467 = vld [vmem:[%s346 + $0x40] sm:$0xff]
      %v468 = vld [vmem:[%s346 + $0x48] sm:$0xff]
      %v469 = vld [vmem:[%s346 + $0x50] sm:$0xff]
      %v470 = vld [vmem:[%s346 + $0x58] sm:$0xff]
      %v471 = vld [vmem:[%s346 + $0x60] sm:$0xff]
      %v472 = vld [vmem:[%s346 + $0x68] sm:$0xff]
      %v473 = vld [vmem:[%s346 + $0x70] sm:$0xff]
      %v474 = vld [vmem:[%s346 + $0x78] sm:$0xff]
      %v475 = vpack.c.bf16 %v460, %v459
      %v476 = vpack.c.bf16 %v462, %v461
      %v477 = vpack.c.bf16 %v464, %v463
      %v478 = vpack.c.bf16 %v466, %v465
      %v479 = vpack.c.bf16 %v468, %v467
      %v480 = vpack.c.bf16 %v470, %v469
      %v481 = vpack.c.bf16 %v472, %v471
      %v482 = vpack.c.bf16 %v474, %v473
      %v491 = vunpack.c.l.b16 %v475
      %v492 = vunpack.c.h.b16 %v475
      %v493 = vunpack.c.l.b16 %v476
      %v494 = vunpack.c.h.b16 %v476
      %v495 = vunpack.c.l.b16 %v477
      %v496 = vunpack.c.h.b16 %v477
      %v497 = vunpack.c.l.b16 %v478
      %v498 = vunpack.c.h.b16 %v478
      %v499 = vunpack.c.l.b16 %v479
      %v500 = vunpack.c.h.b16 %v479
      %v501 = vunpack.c.l.b16 %v480
      %v502 = vunpack.c.h.b16 %v480
      %v503 = vunpack.c.l.b16 %v481
      %v504 = vunpack.c.h.b16 %v481
      %v505 = vunpack.c.l.b16 %v482
      %v506 = vunpack.c.h.b16 %v482
      %v507 = vpack.c.b16 %v491, %v491
      %v508 = vpack.c.b16 %v492, %v492
      %v509 = vpack.c.b16 %v493, %v493
      %v510 = vpack.c.b16 %v494, %v494
      %v511 = vpack.c.b16 %v495, %v495
      %v512 = vpack.c.b16 %v496, %v496
      %v513 = vpack.c.b16 %v497, %v497
      %v514 = vpack.c.b16 %v498, %v498
      %v515 = vpack.c.b16 %v499, %v499
      %v516 = vpack.c.b16 %v500, %v500
      %v517 = vpack.c.b16 %v501, %v501
      %v518 = vpack.c.b16 %v502, %v502
      %v519 = vpack.c.b16 %v503, %v503
      %v520 = vpack.c.b16 %v504, %v504
      %v521 = vpack.c.b16 %v505, %v505
      %v522 = vpack.c.b16 %v506, %v506
      %vm523 = vsmask.f32 4368
      %vm524 = vmor %vm395, %vm523
      %v526 = vshrl.u32 %v507, 16
      %v528 = vrot.slane %v526, 7
      %v529 = vshll.u32 %v507, 16
      %v531 = vor.u32 %v528, %v529
      %v532 = vrot.slane %v528, 4
      %v534 = vshrl.u32 %v508, 16
      %v536 = vrot.slane %v534, 7
      %v537 = vshll.u32 %v508, 16
      %v539 = vor.u32 %v536, %v537
      %v540 = vsel %vm524, %v532, %v539
      %v541 = vrot.slane %v536, 4
      %v543 = vshrl.u32 %v509, 16
      %v545 = vrot.slane %v543, 7
      %v546 = vshll.u32 %v509, 16
      %v548 = vor.u32 %v545, %v546
      %v549 = vrot.slane %v545, 4
      %v551 = vshrl.u32 %v510, 16
      %v553 = vrot.slane %v551, 7
      %v554 = vshll.u32 %v510, 16
      %v556 = vor.u32 %v553, %v554
      %v557 = vsel %vm524, %v549, %v556
      %v558 = vrot.slane %v553, 4
      %v560 = vshrl.u32 %v511, 16
      %v562 = vrot.slane %v560, 7
      %v563 = vshll.u32 %v511, 16
      %v565 = vor.u32 %v562, %v563
      %v566 = vrot.slane %v562, 4
      %v568 = vshrl.u32 %v512, 16
      %v570 = vrot.slane %v568, 7
      %v571 = vshll.u32 %v512, 16
      %v573 = vor.u32 %v570, %v571
      %v574 = vsel %vm524, %v566, %v573
      %v575 = vrot.slane %v570, 4
      %v577 = vshrl.u32 %v513, 16
      %v579 = vrot.slane %v577, 7
      %v580 = vshll.u32 %v513, 16
      %v582 = vor.u32 %v579, %v580
      %v583 = vrot.slane %v579, 4
      %v585 = vshrl.u32 %v514, 16
      %v587 = vrot.slane %v585, 7
      %v588 = vshll.u32 %v514, 16
      %v590 = vor.u32 %v587, %v588
      %v591 = vsel %vm524, %v583, %v590
      %v592 = vrot.slane %v587, 4
      %v594 = vshrl.u32 %v515, 16
      %v596 = vrot.slane %v594, 7
      %v597 = vshll.u32 %v515, 16
      %v599 = vor.u32 %v596, %v597
      %v600 = vrot.slane %v596, 4
      %v602 = vshrl.u32 %v516, 16
      %v604 = vrot.slane %v602, 7
      %v605 = vshll.u32 %v516, 16
      %v607 = vor.u32 %v604, %v605
      %v608 = vsel %vm524, %v600, %v607
      %v609 = vrot.slane %v604, 4
      %v611 = vshrl.u32 %v517, 16
      %v613 = vrot.slane %v611, 7
      %v614 = vshll.u32 %v517, 16
      %v616 = vor.u32 %v613, %v614
      %v617 = vrot.slane %v613, 4
      %v619 = vshrl.u32 %v518, 16
      %v621 = vrot.slane %v619, 7
      %v622 = vshll.u32 %v518, 16
      %v624 = vor.u32 %v621, %v622
      %v625 = vsel %vm524, %v617, %v624
      %v626 = vrot.slane %v621, 4
      %v628 = vshrl.u32 %v519, 16
      %v630 = vrot.slane %v628, 7
      %v631 = vshll.u32 %v519, 16
      %v633 = vor.u32 %v630, %v631
      %v634 = vrot.slane %v630, 4
      %v636 = vshrl.u32 %v520, 16
      %v638 = vrot.slane %v636, 7
      %v639 = vshll.u32 %v520, 16
      %v641 = vor.u32 %v638, %v639
      %v642 = vsel %vm524, %v634, %v641
      %v643 = vrot.slane %v638, 4
      %v645 = vshrl.u32 %v521, 16
      %v647 = vrot.slane %v645, 7
      %v648 = vshll.u32 %v521, 16
      %v650 = vor.u32 %v647, %v648
      %v651 = vrot.slane %v647, 4
      %v653 = vshrl.u32 %v522, 16
      %v655 = vrot.slane %v653, 7
      %v656 = vshll.u32 %v522, 16
      %v658 = vor.u32 %v655, %v656
      %v659 = vsel %vm524, %v651, %v658
      %v660 = vrot.slane %v655, 4
      %s685 = scalar_lea.vmem [#allocation2], 12
      %vm686 = vcmask 27648
      %vm687 = vmand %vm686, %vm427
      %v688 = vld [vmem:[%s685] sm:$0xf]
      %v689 = vsel %vm687, %v531, %v688
      %690 = vst [vmem:[%s685] sm:$0xf] %v689
      %vm691 = vcmask 27648
      %692 = vst.msk [vmem:[%s685 + $0x4] sm:$0xf] %vm691, %v540
      %v693 = vld [vmem:[%s685 + $0x8] sm:$0x1]
      %v694 = vsel %vm396, %v541, %v693
      %695 = vst [vmem:[%s685 + $0x8] sm:$0x1] %v694
      %v696 = vld [vmem:[%s685 + $0xc] sm:$0xf]
      %v697 = vsel %vm687, %v548, %v696
      %698 = vst [vmem:[%s685 + $0xc] sm:$0xf] %v697
      %699 = vst.msk [vmem:[%s685 + $0x10] sm:$0xf] %vm691, %v557
      %v700 = vld [vmem:[%s685 + $0x14] sm:$0x1]
      %v701 = vsel %vm396, %v558, %v700
      %702 = vst [vmem:[%s685 + $0x14] sm:$0x1] %v701
      %v703 = vld [vmem:[%s685 + $0x18] sm:$0xf]
      %v704 = vsel %vm687, %v565, %v703
      %705 = vst [vmem:[%s685 + $0x18] sm:$0xf] %v704
      %706 = vst.msk [vmem:[%s685 + $0x1c] sm:$0xf] %vm691, %v574
      %v707 = vld [vmem:[%s685 + $0x20] sm:$0x1]
      %v708 = vsel %vm396, %v575, %v707
      %709 = vst [vmem:[%s685 + $0x20] sm:$0x1] %v708
      %v710 = vld [vmem:[%s685 + $0x24] sm:$0xf]
      %v711 = vsel %vm687, %v582, %v710
      %712 = vst [vmem:[%s685 + $0x24] sm:$0xf] %v711
      %713 = vst.msk [vmem:[%s685 + $0x28] sm:$0xf] %vm691, %v591
      %v714 = vld [vmem:[%s685 + $0x2c] sm:$0x1]
      %v715 = vsel %vm396, %v592, %v714
      %716 = vst [vmem:[%s685 + $0x2c] sm:$0x1] %v715
      %v717 = vld [vmem:[%s685 + $0x30] sm:$0xf]
      %v718 = vsel %vm687, %v599, %v717
      %719 = vst [vmem:[%s685 + $0x30] sm:$0xf] %v718
      %720 = vst.msk [vmem:[%s685 + $0x34] sm:$0xf] %vm691, %v608
      %v721 = vld [vmem:[%s685 + $0x38] sm:$0x1]
      %v722 = vsel %vm396, %v609, %v721
      %723 = vst [vmem:[%s685 + $0x38] sm:$0x1] %v722
      %v724 = vld [vmem:[%s685 + $0x3c] sm:$0xf]
      %v725 = vsel %vm687, %v616, %v724
      %726 = vst [vmem:[%s685 + $0x3c] sm:$0xf] %v725
      %727 = vst.msk [vmem:[%s685 + $0x40] sm:$0xf] %vm691, %v625
      %v728 = vld [vmem:[%s685 + $0x44] sm:$0x1]
      %v729 = vsel %vm396, %v626, %v728
      %730 = vst [vmem:[%s685 + $0x44] sm:$0x1] %v729
      %v731 = vld [vmem:[%s685 + $0x48] sm:$0xf]
      %v732 = vsel %vm687, %v633, %v731
      %733 = vst [vmem:[%s685 + $0x48] sm:$0xf] %v732
      %734 = vst.msk [vmem:[%s685 + $0x4c] sm:$0xf] %vm691, %v642
      %v735 = vld [vmem:[%s685 + $0x50] sm:$0x1]
      %v736 = vsel %vm396, %v643, %v735
      %737 = vst [vmem:[%s685 + $0x50] sm:$0x1] %v736
      %v738 = vld [vmem:[%s685 + $0x54] sm:$0xf]
      %v739 = vsel %vm687, %v650, %v738
      %740 = vst [vmem:[%s685 + $0x54] sm:$0xf] %v739
      %741 = vst.msk [vmem:[%s685 + $0x58] sm:$0xf] %vm691, %v659
      %v742 = vld [vmem:[%s685 + $0x5c] sm:$0x1]
      %v743 = vsel %vm396, %v660, %v742
      %744 = vst [vmem:[%s685 + $0x5c] sm:$0x1] %v743
      %p745 = scmp.gt.s32.totalorder %s21, 0
      %v746 = vld [vmem:[%s360] sm:$0xff]
      %v747 = vld [vmem:[%s360 + $0x8] sm:$0xff]
      %s748 = scalar_select %p745, 1, 0
      %v749 = vstv %s748
      %vm750 = vcmp.eq.s32.totalorder %v749, 1
      %v751 = vsel %vm750, %v746, 0.0
      %v752 = vsel %vm750, %v747, 0.0
      %v753 = vpack.c.bf16 %v752, %v751
      %p754 = scmp.lt.s32.totalorder %s21, 1
      %v755 = vld [vmem:[%s377] sm:$0xff]
      %v756 = vld [vmem:[%s377 + $0x8] sm:$0xff]
      %s757 = scalar_select %p754, 1, 0
      %v758 = vstv %s757
      %vm759 = vcmp.eq.s32.totalorder %v758, 1
      %v760 = vsel %vm759, %v755, 0.0
      %v761 = vsel %vm759, %v756, 0.0
      %v762 = vpack.c.bf16 %v761, %v760
      %v764 = vunpack.c.l.b16 %v753
      %v765 = vunpack.c.h.b16 %v753
      %v766 = vpack.c.b16 %v764, %v764
      %v767 = vpack.c.b16 %v765, %v765
      %v769 = vshrl.u32 %v766, 16
      %v771 = vrot.slane %v769, 7
      %v772 = vshll.u32 %v766, 16
      %v774 = vor.u32 %v771, %v772
      %v775 = vrot.slane %v771, 4
      %v777 = vshrl.u32 %v767, 16
      %v779 = vrot.slane %v777, 7
      %v780 = vshll.u32 %v767, 16
      %v782 = vor.u32 %v779, %v780
      %v783 = vsel %vm524, %v775, %v782
      %v784 = vrot.slane %v779, 4
      %v788 = vld [vmem:[#allocation2] sm:$0xf]
      %v789 = vsel %vm687, %v774, %v788
      %790 = vst [vmem:[#allocation2] sm:$0xf] %v789
      %791 = vst.msk [vmem:[#allocation2 + $0x4] sm:$0xf] %vm691, %v783
      %v792 = vld [vmem:[#allocation2 + $0x8] sm:$0x1]
      %v793 = vsel %vm396, %v784, %v792
      %794 = vst [vmem:[#allocation2 + $0x8] sm:$0x1] %v793
      %v796 = vunpack.c.l.b16 %v762
      %v797 = vunpack.c.h.b16 %v762
      %v798 = vpack.c.b16 %v796, %v796
      %v799 = vpack.c.b16 %v797, %v797
      %v801 = vshrl.u32 %v798, 16
      %v803 = vrot.slane %v801, 7
      %v804 = vshll.u32 %v798, 16
      %v806 = vor.u32 %v803, %v804
      %v807 = vrot.slane %v803, 4
      %v809 = vshrl.u32 %v799, 16
      %v811 = vrot.slane %v809, 7
      %v812 = vshll.u32 %v799, 16
      %v814 = vor.u32 %v811, %v812
      %v815 = vsel %vm524, %v807, %v814
      %v816 = vrot.slane %v811, 4
      %s820 = scalar_lea.vmem [#allocation2], 108
      %v821 = vld [vmem:[%s820] sm:$0xf]
      %v822 = vsel %vm687, %v806, %v821
      %823 = vst [vmem:[%s820] sm:$0xf] %v822
      %824 = vst.msk [vmem:[%s820 + $0x4] sm:$0xf] %vm691, %v815
      %v825 = vld [vmem:[%s820 + $0x8] sm:$0x1]
      %v826 = vsel %vm396, %v816, %v825
      %827 = vst [vmem:[%s820 + $0x8] sm:$0x1] %v826
      %v828 = vld [vmem:[%s4] sm:$0x1]
      %v830 = vlaneseq
      %v831 = vshrl.u32 %v830, 7
      %v832 = vsub.s32 0, %v831
      %v833 = vrot.slane %v828, %v832
      %v835 = vld [vmem:[#allocation2] sm:$0xf]
      %v836 = vld [vmem:[#allocation2 + $0x4] sm:$0xf]
      %v837 = vld [vmem:[#allocation2 + $0xc] sm:$0xf]
      %v838 = vld [vmem:[#allocation2 + $0x10] sm:$0xf]
      %v839 = vld [vmem:[#allocation2 + $0x18] sm:$0xf]
      %v840 = vld [vmem:[#allocation2 + $0x1c] sm:$0xf]
      %v841 = vld [vmem:[#allocation2 + $0x24] sm:$0xf]
      %v842 = vld [vmem:[#allocation2 + $0x28] sm:$0xf]
      %v843 = vld [vmem:[#allocation2 + $0x30] sm:$0xf]
      %v844 = vld [vmem:[#allocation2 + $0x34] sm:$0xf]
      %v845 = vld [vmem:[#allocation2 + $0x3c] sm:$0xf]
      %v846 = vld [vmem:[#allocation2 + $0x40] sm:$0xf]
      %v847 = vld [vmem:[#allocation2 + $0x48] sm:$0xf]
      %v848 = vld [vmem:[#allocation2 + $0x4c] sm:$0xf]
      %v849 = vld [vmem:[#allocation2 + $0x54] sm:$0xf]
      %v850 = vld [vmem:[#allocation2 + $0x58] sm:$0xf]
      %v851 = vld [vmem:[#allocation2 + $0x8] sm:$0x1]
      %v852 = vld [vmem:[#allocation2 + $0x14] sm:$0x1]
      %v853 = vld [vmem:[#allocation2 + $0x20] sm:$0x1]
      %v854 = vld [vmem:[#allocation2 + $0x2c] sm:$0x1]
      %v855 = vld [vmem:[#allocation2 + $0x38] sm:$0x1]
      %v856 = vld [vmem:[#allocation2 + $0x44] sm:$0x1]
      %v857 = vld [vmem:[#allocation2 + $0x50] sm:$0x1]
      %v858 = vld [vmem:[#allocation2 + $0x5c] sm:$0x1]
      %v859 = vld [vmem:[#allocation2] sm:$0xe]
      %v860 = vld [vmem:[#allocation2 + $0xc] sm:$0xe]
      %v861 = vld [vmem:[#allocation2 + $0x18] sm:$0xe]
      %v862 = vld [vmem:[#allocation2 + $0x24] sm:$0xe]
      %v863 = vld [vmem:[#allocation2 + $0x30] sm:$0xe]
      %v864 = vld [vmem:[#allocation2 + $0x3c] sm:$0xe]
      %v865 = vld [vmem:[#allocation2 + $0x48] sm:$0xe]
      %v866 = vld [vmem:[#allocation2 + $0x54] sm:$0xe]
      %v867 = vld [vmem:[%s685] sm:$0xf]
      %v868 = vld [vmem:[%s685 + $0x4] sm:$0xf]
      %v869 = vld [vmem:[%s685 + $0xc] sm:$0xf]
      %v870 = vld [vmem:[%s685 + $0x10] sm:$0xf]
      %v871 = vld [vmem:[%s685 + $0x18] sm:$0xf]
      %v872 = vld [vmem:[%s685 + $0x1c] sm:$0xf]
      %v873 = vld [vmem:[%s685 + $0x24] sm:$0xf]
      %v874 = vld [vmem:[%s685 + $0x28] sm:$0xf]
      %v875 = vld [vmem:[%s685 + $0x30] sm:$0xf]
      %v876 = vld [vmem:[%s685 + $0x34] sm:$0xf]
      %v877 = vld [vmem:[%s685 + $0x3c] sm:$0xf]
      %v878 = vld [vmem:[%s685 + $0x40] sm:$0xf]
      %v879 = vld [vmem:[%s685 + $0x48] sm:$0xf]
      %v880 = vld [vmem:[%s685 + $0x4c] sm:$0xf]
      %v881 = vld [vmem:[%s685 + $0x54] sm:$0xf]
      %v882 = vld [vmem:[%s685 + $0x58] sm:$0xf]
      %v883 = vld [vmem:[%s685 + $0x8] sm:$0x1]
      %v884 = vld [vmem:[%s685 + $0x14] sm:$0x1]
      %v885 = vld [vmem:[%s685 + $0x20] sm:$0x1]
      %v886 = vld [vmem:[%s685 + $0x2c] sm:$0x1]
      %v887 = vld [vmem:[%s685 + $0x38] sm:$0x1]
      %v888 = vld [vmem:[%s685 + $0x44] sm:$0x1]
      %v889 = vld [vmem:[%s685 + $0x50] sm:$0x1]
      %v890 = vld [vmem:[%s685 + $0x5c] sm:$0x1]
      %v891 = vld [vmem:[%s685] sm:$0xe]
      %v892 = vld [vmem:[%s685 + $0xc] sm:$0xe]
      %v893 = vld [vmem:[%s685 + $0x18] sm:$0xe]
      %v894 = vld [vmem:[%s685 + $0x24] sm:$0xe]
      %v895 = vld [vmem:[%s685 + $0x30] sm:$0xe]
      %v896 = vld [vmem:[%s685 + $0x3c] sm:$0xe]
      %v897 = vld [vmem:[%s685 + $0x48] sm:$0xe]
      %v898 = vld [vmem:[%s685 + $0x54] sm:$0xe]
      %v915 = vunpack.c.l.b16 %v835
      %v916 = vunpack.c.l.b16 %v836
      %v917 = vunpack.c.l.b16 %v837
      %v918 = vunpack.c.l.b16 %v838
      %v919 = vunpack.c.l.b16 %v839
      %v920 = vunpack.c.l.b16 %v840
      %v921 = vunpack.c.l.b16 %v841
      %v922 = vunpack.c.l.b16 %v842
      %v923 = vunpack.c.l.b16 %v843
      %v924 = vunpack.c.l.b16 %v844
      %v925 = vunpack.c.l.b16 %v845
      %v926 = vunpack.c.l.b16 %v846
      %v927 = vunpack.c.l.b16 %v847
      %v928 = vunpack.c.l.b16 %v848
      %v929 = vunpack.c.l.b16 %v849
      %v930 = vunpack.c.l.b16 %v850
      %v931 = vpack.c.b16 %v916, %v915
      %v932 = vpack.c.b16 %v918, %v917
      %v933 = vpack.c.b16 %v920, %v919
      %v934 = vpack.c.b16 %v922, %v921
      %v935 = vpack.c.b16 %v924, %v923
      %v936 = vpack.c.b16 %v926, %v925
      %v937 = vpack.c.b16 %v928, %v927
      %v938 = vpack.c.b16 %v930, %v929
      %v947 = vunpack.c.l.b16 %v851
      %v948 = vunpack.c.l.b16 %v852
      %v949 = vunpack.c.l.b16 %v853
      %v950 = vunpack.c.l.b16 %v854
      %v951 = vunpack.c.l.b16 %v855
      %v952 = vunpack.c.l.b16 %v856
      %v953 = vunpack.c.l.b16 %v857
      %v954 = vunpack.c.l.b16 %v858
      %v955 = vpack.c.b16 %v947, %v947
      %v956 = vpack.c.b16 %v948, %v948
      %v957 = vpack.c.b16 %v949, %v949
      %v958 = vpack.c.b16 %v950, %v950
      %v959 = vpack.c.b16 %v951, %v951
      %v960 = vpack.c.b16 %v952, %v952
      %v961 = vpack.c.b16 %v953, %v953
      %v962 = vpack.c.b16 %v954, %v954
      %vm963 = vsmask.f32 7424
      %v965 = vshrl.u32 %v931, 16
      %v967 = vshll.u32 %v931, 16
      %v969 = vrot.slane %v967, 1
      %v970 = vor.u32 %v965, %v969
      %v972 = vshll.u32 %v955, 16
      %v974 = vrot.slane %v972, 1
      %v975 = vsel %vm963, %v970, %v974
      %v977 = vshrl.u32 %v932, 16
      %v979 = vshll.u32 %v932, 16
      %v981 = vrot.slane %v979, 1
      %v982 = vor.u32 %v977, %v981
      %v984 = vshll.u32 %v956, 16
      %v986 = vrot.slane %v984, 1
      %v987 = vsel %vm963, %v982, %v986
      %v989 = vshrl.u32 %v933, 16
      %v991 = vshll.u32 %v933, 16
      %v993 = vrot.slane %v991, 1
      %v994 = vor.u32 %v989, %v993
      %v996 = vshll.u32 %v957, 16
      %v998 = vrot.slane %v996, 1
      %v999 = vsel %vm963, %v994, %v998
      %v1001 = vshrl.u32 %v934, 16
      %v1003 = vshll.u32 %v934, 16
      %v1005 = vrot.slane %v1003, 1
      %v1006 = vor.u32 %v1001, %v1005
      %v1008 = vshll.u32 %v958, 16
      %v1010 = vrot.slane %v1008, 1
      %v1011 = vsel %vm963, %v1006, %v1010
      %v1013 = vshrl.u32 %v935, 16
      %v1015 = vshll.u32 %v935, 16
      %v1017 = vrot.slane %v1015, 1
      %v1018 = vor.u32 %v1013, %v1017
      %v1020 = vshll.u32 %v959, 16
      %v1022 = vrot.slane %v1020, 1
      %v1023 = vsel %vm963, %v1018, %v1022
      %v1025 = vshrl.u32 %v936, 16
      %v1027 = vshll.u32 %v936, 16
      %v1029 = vrot.slane %v1027, 1
      %v1030 = vor.u32 %v1025, %v1029
      %v1032 = vshll.u32 %v960, 16
      %v1034 = vrot.slane %v1032, 1
      %v1035 = vsel %vm963, %v1030, %v1034
      %v1037 = vshrl.u32 %v937, 16
      %v1039 = vshll.u32 %v937, 16
      %v1041 = vrot.slane %v1039, 1
      %v1042 = vor.u32 %v1037, %v1041
      %v1044 = vshll.u32 %v961, 16
      %v1046 = vrot.slane %v1044, 1
      %v1047 = vsel %vm963, %v1042, %v1046
      %v1049 = vshrl.u32 %v938, 16
      %v1051 = vshll.u32 %v938, 16
      %v1053 = vrot.slane %v1051, 1
      %v1054 = vor.u32 %v1049, %v1053
      %v1056 = vshll.u32 %v962, 16
      %v1058 = vrot.slane %v1056, 1
      %v1059 = vsel %vm963, %v1054, %v1058
      %1060 = vrot.lane.b32.xlu0 %v975, 4
      %v1061 = vpop.permute.xlu0 %1060
      %1062 = vrot.lane.b32.xlu0 %v987, 4
      %v1063 = vpop.permute.xlu0 %1062
      %1064 = vrot.lane.b32.xlu0 %v999, 4
      %v1065 = vpop.permute.xlu0 %1064
      %1066 = vrot.lane.b32.xlu0 %v1011, 4
      %v1067 = vpop.permute.xlu0 %1066
      %1068 = vrot.lane.b32.xlu0 %v1023, 4
      %v1069 = vpop.permute.xlu0 %1068
      %1070 = vrot.lane.b32.xlu0 %v1035, 4
      %v1071 = vpop.permute.xlu0 %1070
      %1072 = vrot.lane.b32.xlu0 %v1047, 4
      %v1073 = vpop.permute.xlu0 %1072
      %1074 = vrot.lane.b32.xlu0 %v1059, 4
      %v1075 = vpop.permute.xlu0 %1074
      %v1084 = vunpack.c.l.b16 %v859
      %v1085 = vunpack.c.l.b16 %v860
      %v1086 = vunpack.c.l.b16 %v861
      %v1087 = vunpack.c.l.b16 %v862
      %v1088 = vunpack.c.l.b16 %v863
      %v1089 = vunpack.c.l.b16 %v864
      %v1090 = vunpack.c.l.b16 %v865
      %v1091 = vunpack.c.l.b16 %v866
      %v1092 = vpack.c.b16 %v916, %v1084
      %v1093 = vpack.c.b16 %v918, %v1085
      %v1094 = vpack.c.b16 %v920, %v1086
      %v1095 = vpack.c.b16 %v922, %v1087
      %v1096 = vpack.c.b16 %v924, %v1088
      %v1097 = vpack.c.b16 %v926, %v1089
      %v1098 = vpack.c.b16 %v928, %v1090
      %v1099 = vpack.c.b16 %v930, %v1091
      %vm1100 = vcmask 1046528
      %v1101 = vrot.slane %v1092, 1
      %v1102 = vrot.slane %v955, 1
      %v1103 = vsel %vm1100, %v1101, %v1102
      %v1104 = vrot.slane %v1093, 1
      %v1105 = vrot.slane %v956, 1
      %v1106 = vsel %vm1100, %v1104, %v1105
      %v1107 = vrot.slane %v1094, 1
      %v1108 = vrot.slane %v957, 1
      %v1109 = vsel %vm1100, %v1107, %v1108
      %v1110 = vrot.slane %v1095, 1
      %v1111 = vrot.slane %v958, 1
      %v1112 = vsel %vm1100, %v1110, %v1111
      %v1113 = vrot.slane %v1096, 1
      %v1114 = vrot.slane %v959, 1
      %v1115 = vsel %vm1100, %v1113, %v1114
      %v1116 = vrot.slane %v1097, 1
      %v1117 = vrot.slane %v960, 1
      %v1118 = vsel %vm1100, %v1116, %v1117
      %v1119 = vrot.slane %v1098, 1
      %v1120 = vrot.slane %v961, 1
      %v1121 = vsel %vm1100, %v1119, %v1120
      %v1122 = vrot.slane %v1099, 1
      %v1123 = vrot.slane %v962, 1
      %v1124 = vsel %vm1100, %v1122, %v1123
      %1125 = vrot.lane.b32.xlu0 %v1103, 8
      %v1126 = vpop.permute.xlu0 %1125
      %1127 = vrot.lane.b32.xlu0 %v1106, 8
      %v1128 = vpop.permute.xlu0 %1127
      %1129 = vrot.lane.b32.xlu0 %v1109, 8
      %v1130 = vpop.permute.xlu0 %1129
      %1131 = vrot.lane.b32.xlu0 %v1112, 8
      %v1132 = vpop.permute.xlu0 %1131
      %1133 = vrot.lane.b32.xlu0 %v1115, 8
      %v1134 = vpop.permute.xlu0 %1133
      %1135 = vrot.lane.b32.xlu0 %v1118, 8
      %v1136 = vpop.permute.xlu0 %1135
      %1137 = vrot.lane.b32.xlu0 %v1121, 8
      %v1138 = vpop.permute.xlu0 %1137
      %1139 = vrot.lane.b32.xlu0 %v1124, 8
      %v1140 = vpop.permute.xlu0 %1139
      %v1157 = vunpack.c.l.b16 %v867
      %v1158 = vunpack.c.l.b16 %v868
      %v1159 = vunpack.c.l.b16 %v869
      %v1160 = vunpack.c.l.b16 %v870
      %v1161 = vunpack.c.l.b16 %v871
      %v1162 = vunpack.c.l.b16 %v872
      %v1163 = vunpack.c.l.b16 %v873
      %v1164 = vunpack.c.l.b16 %v874
      %v1165 = vunpack.c.l.b16 %v875
      %v1166 = vunpack.c.l.b16 %v876
      %v1167 = vunpack.c.l.b16 %v877
      %v1168 = vunpack.c.l.b16 %v878
      %v1169 = vunpack.c.l.b16 %v879
      %v1170 = vunpack.c.l.b16 %v880
      %v1171 = vunpack.c.l.b16 %v881
      %v1172 = vunpack.c.l.b16 %v882
      %v1173 = vpack.c.b16 %v1158, %v1157
      %v1174 = vpack.c.b16 %v1160, %v1159
      %v1175 = vpack.c.b16 %v1162, %v1161
      %v1176 = vpack.c.b16 %v1164, %v1163
      %v1177 = vpack.c.b16 %v1166, %v1165
      %v1178 = vpack.c.b16 %v1168, %v1167
      %v1179 = vpack.c.b16 %v1170, %v1169
      %v1180 = vpack.c.b16 %v1172, %v1171
      %1181 = vrot.lane.b32.xlu0 %v1173, 12
      %v1182 = vpop.permute.xlu0 %1181
      %1183 = vrot.lane.b32.xlu0 %v1174, 12
      %v1184 = vpop.permute.xlu0 %1183
      %1185 = vrot.lane.b32.xlu0 %v1175, 12
      %v1186 = vpop.permute.xlu0 %1185
      %1187 = vrot.lane.b32.xlu0 %v1176, 12
      %v1188 = vpop.permute.xlu0 %1187
      %1189 = vrot.lane.b32.xlu0 %v1177, 12
      %v1190 = vpop.permute.xlu0 %1189
      %1191 = vrot.lane.b32.xlu0 %v1178, 12
      %v1192 = vpop.permute.xlu0 %1191
      %1193 = vrot.lane.b32.xlu0 %v1179, 12
      %v1194 = vpop.permute.xlu0 %1193
      %1195 = vrot.lane.b32.xlu0 %v1180, 12
      %v1196 = vpop.permute.xlu0 %1195
      %v1205 = vunpack.c.l.b16 %v883
      %v1206 = vunpack.c.l.b16 %v884
      %v1207 = vunpack.c.l.b16 %v885
      %v1208 = vunpack.c.l.b16 %v886
      %v1209 = vunpack.c.l.b16 %v887
      %v1210 = vunpack.c.l.b16 %v888
      %v1211 = vunpack.c.l.b16 %v889
      %v1212 = vunpack.c.l.b16 %v890
      %v1213 = vpack.c.b16 %v1205, %v1205
      %v1214 = vpack.c.b16 %v1206, %v1206
      %v1215 = vpack.c.b16 %v1207, %v1207
      %v1216 = vpack.c.b16 %v1208, %v1208
      %v1217 = vpack.c.b16 %v1209, %v1209
      %v1218 = vpack.c.b16 %v1210, %v1210
      %v1219 = vpack.c.b16 %v1211, %v1211
      %v1220 = vpack.c.b16 %v1212, %v1212
      %v1222 = vshrl.u32 %v1173, 16
      %v1224 = vshll.u32 %v1173, 16
      %v1226 = vrot.slane %v1224, 1
      %v1227 = vor.u32 %v1222, %v1226
      %v1229 = vshll.u32 %v1213, 16
      %v1231 = vrot.slane %v1229, 1
      %v1232 = vsel %vm963, %v1227, %v1231
      %v1234 = vshrl.u32 %v1174, 16
      %v1236 = vshll.u32 %v1174, 16
      %v1238 = vrot.slane %v1236, 1
      %v1239 = vor.u32 %v1234, %v1238
      %v1241 = vshll.u32 %v1214, 16
      %v1243 = vrot.slane %v1241, 1
      %v1244 = vsel %vm963, %v1239, %v1243
      %v1246 = vshrl.u32 %v1175, 16
      %v1248 = vshll.u32 %v1175, 16
      %v1250 = vrot.slane %v1248, 1
      %v1251 = vor.u32 %v1246, %v1250
      %v1253 = vshll.u32 %v1215, 16
      %v1255 = vrot.slane %v1253, 1
      %v1256 = vsel %vm963, %v1251, %v1255
      %v1258 = vshrl.u32 %v1176, 16
      %v1260 = vshll.u32 %v1176, 16
      %v1262 = vrot.slane %v1260, 1
      %v1263 = vor.u32 %v1258, %v1262
      %v1265 = vshll.u32 %v1216, 16
      %v1267 = vrot.slane %v1265, 1
      %v1268 = vsel %vm963, %v1263, %v1267
      %v1270 = vshrl.u32 %v1177, 16
      %v1272 = vshll.u32 %v1177, 16
      %v1274 = vrot.slane %v1272, 1
      %v1275 = vor.u32 %v1270, %v1274
      %v1277 = vshll.u32 %v1217, 16
      %v1279 = vrot.slane %v1277, 1
      %v1280 = vsel %vm963, %v1275, %v1279
      %v1282 = vshrl.u32 %v1178, 16
      %v1284 = vshll.u32 %v1178, 16
      %v1286 = vrot.slane %v1284, 1
      %v1287 = vor.u32 %v1282, %v1286
      %v1289 = vshll.u32 %v1218, 16
      %v1291 = vrot.slane %v1289, 1
      %v1292 = vsel %vm963, %v1287, %v1291
      %v1294 = vshrl.u32 %v1179, 16
      %v1296 = vshll.u32 %v1179, 16
      %v1298 = vrot.slane %v1296, 1
      %v1299 = vor.u32 %v1294, %v1298
      %v1301 = vshll.u32 %v1219, 16
      %v1303 = vrot.slane %v1301, 1
      %v1304 = vsel %vm963, %v1299, %v1303
      %v1306 = vshrl.u32 %v1180, 16
      %v1308 = vshll.u32 %v1180, 16
      %v1310 = vrot.slane %v1308, 1
      %v1311 = vor.u32 %v1306, %v1310
      %v1313 = vshll.u32 %v1220, 16
      %v1315 = vrot.slane %v1313, 1
      %v1316 = vsel %vm963, %v1311, %v1315
      %1317 = vrot.lane.b32.xlu0 %v1232, 16
      %v1318 = vpop.permute.xlu0 %1317
      %1319 = vrot.lane.b32.xlu0 %v1244, 16
      %v1320 = vpop.permute.xlu0 %1319
      %1321 = vrot.lane.b32.xlu0 %v1256, 16
      %v1322 = vpop.permute.xlu0 %1321
      %1323 = vrot.lane.b32.xlu0 %v1268, 16
      %v1324 = vpop.permute.xlu0 %1323
      %1325 = vrot.lane.b32.xlu0 %v1280, 16
      %v1326 = vpop.permute.xlu0 %1325
      %1327 = vrot.lane.b32.xlu0 %v1292, 16
      %v1328 = vpop.permute.xlu0 %1327
      %1329 = vrot.lane.b32.xlu0 %v1304, 16
      %v1330 = vpop.permute.xlu0 %1329
      %1331 = vrot.lane.b32.xlu0 %v1316, 16
      %v1332 = vpop.permute.xlu0 %1331
      %v1341 = vunpack.c.l.b16 %v891
      %v1342 = vunpack.c.l.b16 %v892
      %v1343 = vunpack.c.l.b16 %v893
      %v1344 = vunpack.c.l.b16 %v894
      %v1345 = vunpack.c.l.b16 %v895
      %v1346 = vunpack.c.l.b16 %v896
      %v1347 = vunpack.c.l.b16 %v897
      %v1348 = vunpack.c.l.b16 %v898
      %v1349 = vpack.c.b16 %v1158, %v1341
      %v1350 = vpack.c.b16 %v1160, %v1342
      %v1351 = vpack.c.b16 %v1162, %v1343
      %v1352 = vpack.c.b16 %v1164, %v1344
      %v1353 = vpack.c.b16 %v1166, %v1345
      %v1354 = vpack.c.b16 %v1168, %v1346
      %v1355 = vpack.c.b16 %v1170, %v1347
      %v1356 = vpack.c.b16 %v1172, %v1348
      %v1357 = vrot.slane %v1349, 1
      %v1358 = vrot.slane %v1213, 1
      %v1359 = vsel %vm1100, %v1357, %v1358
      %v1360 = vrot.slane %v1350, 1
      %v1361 = vrot.slane %v1214, 1
      %v1362 = vsel %vm1100, %v1360, %v1361
      %v1363 = vrot.slane %v1351, 1
      %v1364 = vrot.slane %v1215, 1
      %v1365 = vsel %vm1100, %v1363, %v1364
      %v1366 = vrot.slane %v1352, 1
      %v1367 = vrot.slane %v1216, 1
      %v1368 = vsel %vm1100, %v1366, %v1367
      %v1369 = vrot.slane %v1353, 1
      %v1370 = vrot.slane %v1217, 1
      %v1371 = vsel %vm1100, %v1369, %v1370
      %v1372 = vrot.slane %v1354, 1
      %v1373 = vrot.slane %v1218, 1
      %v1374 = vsel %vm1100, %v1372, %v1373
      %v1375 = vrot.slane %v1355, 1
      %v1376 = vrot.slane %v1219, 1
      %v1377 = vsel %vm1100, %v1375, %v1376
      %v1378 = vrot.slane %v1356, 1
      %v1379 = vrot.slane %v1220, 1
      %v1380 = vsel %vm1100, %v1378, %v1379
      %1381 = vrot.lane.b32.xlu0 %v1359, 20
      %v1382 = vpop.permute.xlu0 %1381
      %1383 = vrot.lane.b32.xlu0 %v1362, 20
      %v1384 = vpop.permute.xlu0 %1383
      %1385 = vrot.lane.b32.xlu0 %v1365, 20
      %v1386 = vpop.permute.xlu0 %1385
      %1387 = vrot.lane.b32.xlu0 %v1368, 20
      %v1388 = vpop.permute.xlu0 %1387
      %1389 = vrot.lane.b32.xlu0 %v1371, 20
      %v1390 = vpop.permute.xlu0 %1389
      %1391 = vrot.lane.b32.xlu0 %v1374, 20
      %v1392 = vpop.permute.xlu0 %1391
      %1393 = vrot.lane.b32.xlu0 %v1377, 20
      %v1394 = vpop.permute.xlu0 %1393
      %1395 = vrot.lane.b32.xlu0 %v1380, 20
      %v1396 = vpop.permute.xlu0 %1395
      %vm1397 = vcmask 31744
      %v1399 = vsel %vm1397, %v931, %v1061
      %v1401 = vsel %vm1397, %v932, %v1063
      %v1403 = vsel %vm1397, %v933, %v1065
      %v1405 = vsel %vm1397, %v934, %v1067
      %v1407 = vsel %vm1397, %v935, %v1069
      %v1409 = vsel %vm1397, %v936, %v1071
      %v1411 = vsel %vm1397, %v937, %v1073
      %v1413 = vsel %vm1397, %v938, %v1075
      %vm1414 = vcmask 64512
      %v1416 = vsel %vm1414, %v1399, %v1126
      %v1418 = vsel %vm1414, %v1401, %v1128
      %v1420 = vsel %vm1414, %v1403, %v1130
      %v1422 = vsel %vm1414, %v1405, %v1132
      %v1424 = vsel %vm1414, %v1407, %v1134
      %v1426 = vsel %vm1414, %v1409, %v1136
      %v1428 = vsel %vm1414, %v1411, %v1138
      %v1430 = vsel %vm1414, %v1413, %v1140
      %vm1431 = vcmask 97280
      %v1433 = vsel %vm1431, %v1416, %v1182
      %v1435 = vsel %vm1431, %v1418, %v1184
      %v1437 = vsel %vm1431, %v1420, %v1186
      %v1439 = vsel %vm1431, %v1422, %v1188
      %v1441 = vsel %vm1431, %v1424, %v1190
      %v1443 = vsel %vm1431, %v1426, %v1192
      %v1445 = vsel %vm1431, %v1428, %v1194
      %v1447 = vsel %vm1431, %v1430, %v1196
      %vm1448 = vcmask 130048
      %v1450 = vsel %vm1448, %v1433, %v1318
      %v1452 = vsel %vm1448, %v1435, %v1320
      %v1454 = vsel %vm1448, %v1437, %v1322
      %v1456 = vsel %vm1448, %v1439, %v1324
      %v1458 = vsel %vm1448, %v1441, %v1326
      %v1460 = vsel %vm1448, %v1443, %v1328
      %v1462 = vsel %vm1448, %v1445, %v1330
      %v1464 = vsel %vm1448, %v1447, %v1332
      %vm1465 = vcmask 162816
      %v1467 = vsel %vm1465, %v1450, %v1382
      %v1469 = vsel %vm1465, %v1452, %v1384
      %v1471 = vsel %vm1465, %v1454, %v1386
      %v1473 = vsel %vm1465, %v1456, %v1388
      %v1475 = vsel %vm1465, %v1458, %v1390
      %v1477 = vsel %vm1465, %v1460, %v1392
      %v1479 = vsel %vm1465, %v1462, %v1394
      %v1481 = vsel %vm1465, %v1464, %v1396
      %v1482 = vld [vmem:[%s3] sm:$0xf]
      %v1483 = vld [vmem:[%s3 + $0x4] sm:$0xf]
      %v1484 = vld [vmem:[%s3 + $0x8] sm:$0xf]
      %v1488 = vunpack.c.l.b16 %v1482
      %v1489 = vunpack.c.l.b16 %v1483
      %v1490 = vunpack.c.l.b16 %v1484
      %v1491 = vpack.c.b16 %v1489, %v1488
      %v1492 = vpack.c.b16 %v1490, %v1490
      %vm1494 = vcmask 195584
      %v1495 = vsel %vm1494, %v1467, 0
      %v1497 = vsel %vm1494, %v1469, 0
      %v1499 = vsel %vm1494, %v1471, 0
      %v1501 = vsel %vm1494, %v1473, 0
      %v1503 = vsel %vm1494, %v1475, 0
      %v1505 = vsel %vm1494, %v1477, 0
      %v1507 = vsel %vm1494, %v1479, 0
      %v1509 = vsel %vm1494, %v1481, 0
      %vm1511 = vcmask 1043456
      %v1513 = vsel %vm1511, %v1492, 0
      %1515 = vmatprep.subr.bf16.mxu0 0
      %1516 = vmatpush1.bf16.msra.mxu0 %v1491
      %1517 = vmatprep.subr.bf16.mxu0 0
      %1518 = vmatpush1.bf16.msra.mxu0 %v1513
      %1519 = vmatprep.subr.bf16.mxu0 0
      %1520 = vmatpush1.bf16.msra.mxu0 0
      %1521 = vmatprep.subr.bf16.mxu0 0
      %1522 = vmatpush1.bf16.msra.mxu0 0
      %1523 = vmatprep.subr.bf16.mxu0 0
      %1524 = vmatpush1.bf16.msra.mxu0 0
      %1525 = vmatprep.subr.bf16.mxu0 0
      %1526 = vmatpush1.bf16.msra.mxu0 0
      %1527 = vmatprep.subr.bf16.mxu0 0
      %1528 = vmatpush1.bf16.msra.mxu0 0
      %1529 = vmatprep.subr.bf16.mxu0 0
      %1530 = vmatpush1.bf16.msra.mxu0 0
      %1531 = vmatprep.subr.bf16.mxu0 0
      %1532 = vmatpush1.bf16.msra.mxu0 0
      %1533 = vmatprep.subr.bf16.mxu0 0
      %1534 = vmatpush1.bf16.msra.mxu0 0
      %1535 = vmatprep.subr.bf16.mxu0 0
      %1536 = vmatpush1.bf16.msra.mxu0 0
      %1537 = vmatprep.subr.bf16.mxu0 0
      %1538 = vmatpush1.bf16.msra.mxu0 0
      %1539 = vmatprep.subr.bf16.mxu0 0
      %1540 = vmatpush1.bf16.msra.mxu0 0
      %1541 = vmatprep.subr.bf16.mxu0 0
      %1542 = vmatpush1.bf16.msra.mxu0 0
      %1543 = vmatprep.subr.bf16.mxu0 0
      %1544 = vmatpush1.bf16.msra.mxu0 0
      %1545 = vmatprep.subr.bf16.mxu0 0
      %1546 = vmatpush1.bf16.msra.mxu0 0
      %1547 = vmatprep.mubr.bf16.mxu0 0
      %1548 = vmatmul.mubr.bf16.gmra.mrb[0].mxu0 %v1495
      %v1549 = vpop.f32.mrb[0].mxu0
      %v1550 = vadd.f32 %v833, %v1549
      %v1551 = vpop.f32.mrb[0].mxu0
      %v1552 = vpop.f32.mrb[0].mxu0
      %v1553 = vadd.f32 %v833, %v1552
      %v1554 = vpop.f32.mrb[0].mxu0
      %1555 = vmatprep.mubr.bf16.mxu0 0
      %1556 = vmatmul.mubr.bf16.gmra.mrb[0].mxu0 %v1497
      %v1557 = vpop.f32.mrb[0].mxu0
      %v1558 = vadd.f32 %v833, %v1557
      %v1559 = vpop.f32.mrb[0].mxu0
      %v1560 = vpop.f32.mrb[0].mxu0
      %v1561 = vadd.f32 %v833, %v1560
      %v1562 = vpop.f32.mrb[0].mxu0
      %1563 = vmatprep.mubr.bf16.mxu0 0
      %1564 = vmatmul.mubr.bf16.gmra.mrb[0].mxu0 %v1499
      %v1565 = vpop.f32.mrb[0].mxu0
      %v1566 = vadd.f32 %v833, %v1565
      %v1567 = vpop.f32.mrb[0].mxu0
      %v1568 = vpop.f32.mrb[0].mxu0
      %v1569 = vadd.f32 %v833, %v1568
      %v1570 = vpop.f32.mrb[0].mxu0
      %1571 = vmatprep.mubr.bf16.mxu0 0
      %1572 = vmatmul.mubr.bf16.gmra.mrb[0].mxu0 %v1501
      %v1573 = vpop.f32.mrb[0].mxu0
      %v1574 = vadd.f32 %v833, %v1573
      %v1575 = vpop.f32.mrb[0].mxu0
      %v1576 = vpop.f32.mrb[0].mxu0
      %v1577 = vadd.f32 %v833, %v1576
      %v1578 = vpop.f32.mrb[0].mxu0
      %1579 = vmatprep.mubr.bf16.mxu0 0
      %1580 = vmatmul.mubr.bf16.gmra.mrb[0].mxu0 %v1503
      %v1581 = vpop.f32.mrb[0].mxu0
      %v1582 = vadd.f32 %v833, %v1581
      %v1583 = vpop.f32.mrb[0].mxu0
      %v1584 = vpop.f32.mrb[0].mxu0
      %v1585 = vadd.f32 %v833, %v1584
      %v1586 = vpop.f32.mrb[0].mxu0
      %1587 = vmatprep.mubr.bf16.mxu0 0
      %1588 = vmatmul.mubr.bf16.gmra.mrb[0].mxu0 %v1505
      %v1589 = vpop.f32.mrb[0].mxu0
      %v1590 = vadd.f32 %v833, %v1589
      %v1591 = vpop.f32.mrb[0].mxu0
      %v1592 = vpop.f32.mrb[0].mxu0
      %v1593 = vadd.f32 %v833, %v1592
      %v1594 = vpop.f32.mrb[0].mxu0
      %1595 = vmatprep.mubr.bf16.mxu0 0
      %1596 = vmatmul.mubr.bf16.gmra.mrb[0].mxu0 %v1507
      %v1597 = vpop.f32.mrb[0].mxu0
      %v1598 = vadd.f32 %v833, %v1597
      %v1599 = vpop.f32.mrb[0].mxu0
      %v1600 = vpop.f32.mrb[0].mxu0
      %v1601 = vadd.f32 %v833, %v1600
      %v1602 = vpop.f32.mrb[0].mxu0
      %1603 = vmatprep.mubr.bf16.mxu0 0
      %1604 = vmatmul.mubr.bf16.gmra.mrb[0].mxu0 %v1509
      %v1605 = vpop.f32.mrb[0].mxu0
      %v1606 = vadd.f32 %v833, %v1605
      %v1607 = vpop.f32.mrb[0].mxu0
      %v1608 = vpop.f32.mrb[0].mxu0
      %v1609 = vadd.f32 %v833, %v1608
      %v1610 = vpop.f32.mrb[0].mxu0
      %1611 = vdwg.mxu0
      %1612 = vst.msk [vmem:[%s391] sm:$0xff] %vm1414, %v1550
      %1613 = vst.msk [vmem:[%s391 + $0x8] sm:$0xff] %vm1414, %v1553
      %1614 = vst.msk [vmem:[%s391 + $0x20] sm:$0xff] %vm1414, %v1558
      %1615 = vst.msk [vmem:[%s391 + $0x28] sm:$0xff] %vm1414, %v1561
      %1616 = vst.msk [vmem:[%s391 + $0x40] sm:$0xff] %vm1414, %v1566
      %1617 = vst.msk [vmem:[%s391 + $0x48] sm:$0xff] %vm1414, %v1569
      %1618 = vst.msk [vmem:[%s391 + $0x60] sm:$0xff] %vm1414, %v1574
      %1619 = vst.msk [vmem:[%s391 + $0x68] sm:$0xff] %vm1414, %v1577
      %1620 = vst.msk [vmem:[%s391 + $0x80] sm:$0xff] %vm1414, %v1582
      %1621 = vst.msk [vmem:[%s391 + $0x88] sm:$0xff] %vm1414, %v1585
      %1622 = vst.msk [vmem:[%s391 + $0xa0] sm:$0xff] %vm1414, %v1590
      %1623 = vst.msk [vmem:[%s391 + $0xa8] sm:$0xff] %vm1414, %v1593
      %1624 = vst.msk [vmem:[%s391 + $0xc0] sm:$0xff] %vm1414, %v1598
      %1625 = vst.msk [vmem:[%s391 + $0xc8] sm:$0xff] %vm1414, %v1601
      %1626 = vst.msk [vmem:[%s391 + $0xe0] sm:$0xff] %vm1414, %v1606
      %1627 = vst.msk [vmem:[%s391 + $0xe8] sm:$0xff] %vm1414, %v1609
      %v1628 = vld [vmem:[%s685] sm:$0xf]
      %v1629 = vld [vmem:[%s685 + $0x4] sm:$0xf]
      %v1630 = vld [vmem:[%s685 + $0xc] sm:$0xf]
      %v1631 = vld [vmem:[%s685 + $0x10] sm:$0xf]
      %v1632 = vld [vmem:[%s685 + $0x18] sm:$0xf]
      %v1633 = vld [vmem:[%s685 + $0x1c] sm:$0xf]
      %v1634 = vld [vmem:[%s685 + $0x24] sm:$0xf]
      %v1635 = vld [vmem:[%s685 + $0x28] sm:$0xf]
      %v1636 = vld [vmem:[%s685 + $0x30] sm:$0xf]
      %v1637 = vld [vmem:[%s685 + $0x34] sm:$0xf]
      %v1638 = vld [vmem:[%s685 + $0x3c] sm:$0xf]
      %v1639 = vld [vmem:[%s685 + $0x40] sm:$0xf]
      %v1640 = vld [vmem:[%s685 + $0x48] sm:$0xf]
      %v1641 = vld [vmem:[%s685 + $0x4c] sm:$0xf]
      %v1642 = vld [vmem:[%s685 + $0x54] sm:$0xf]
      %v1643 = vld [vmem:[%s685 + $0x58] sm:$0xf]
      %v1644 = vld [vmem:[%s685 + $0x8] sm:$0x1]
      %v1645 = vld [vmem:[%s685 + $0x14] sm:$0x1]
      %v1646 = vld [vmem:[%s685 + $0x20] sm:$0x1]
      %v1647 = vld [vmem:[%s685 + $0x2c] sm:$0x1]
      %v1648 = vld [vmem:[%s685 + $0x38] sm:$0x1]
      %v1649 = vld [vmem:[%s685 + $0x44] sm:$0x1]
      %v1650 = vld [vmem:[%s685 + $0x50] sm:$0x1]
      %v1651 = vld [vmem:[%s685 + $0x5c] sm:$0x1]
      %v1652 = vld [vmem:[%s685] sm:$0xe]
      %v1653 = vld [vmem:[%s685 + $0xc] sm:$0xe]
      %v1654 = vld [vmem:[%s685 + $0x18] sm:$0xe]
      %v1655 = vld [vmem:[%s685 + $0x24] sm:$0xe]
      %v1656 = vld [vmem:[%s685 + $0x30] sm:$0xe]
      %v1657 = vld [vmem:[%s685 + $0x3c] sm:$0xe]
      %v1658 = vld [vmem:[%s685 + $0x48] sm:$0xe]
      %v1659 = vld [vmem:[%s685 + $0x54] sm:$0xe]
      %s1660 = scalar_lea.vmem [#allocation2], 24
      %v1661 = vld [vmem:[%s1660] sm:$0xf]
      %v1662 = vld [vmem:[%s1660 + $0x4] sm:$0xf]
      %v1663 = vld [vmem:[%s1660 + $0xc] sm:$0xf]
      %v1664 = vld [vmem:[%s1660 + $0x10] sm:$0xf]
      %v1665 = vld [vmem:[%s1660 + $0x18] sm:$0xf]
      %v1666 = vld [vmem:[%s1660 + $0x1c] sm:$0xf]
      %v1667 = vld [vmem:[%s1660 + $0x24] sm:$0xf]
      %v1668 = vld [vmem:[%s1660 + $0x28] sm:$0xf]
      %v1669 = vld [vmem:[%s1660 + $0x30] sm:$0xf]
      %v1670 = vld [vmem:[%s1660 + $0x34] sm:$0xf]
      %v1671 = vld [vmem:[%s1660 + $0x3c] sm:$0xf]
      %v1672 = vld [vmem:[%s1660 + $0x40] sm:$0xf]
      %v1673 = vld [vmem:[%s1660 + $0x48] sm:$0xf]
      %v1674 = vld [vmem:[%s1660 + $0x4c] sm:$0xf]
      %v1675 = vld [vmem:[%s1660 + $0x54] sm:$0xf]
      %v1676 = vld [vmem:[%s1660 + $0x58] sm:$0xf]
      %v1677 = vld [vmem:[%s1660 + $0x8] sm:$0x1]
      %v1678 = vld [vmem:[%s1660 + $0x14] sm:$0x1]
      %v1679 = vld [vmem:[%s1660 + $0x20] sm:$0x1]
      %v1680 = vld [vmem:[%s1660 + $0x2c] sm:$0x1]
      %v1681 = vld [vmem:[%s1660 + $0x38] sm:$0x1]
      %v1682 = vld [vmem:[%s1660 + $0x44] sm:$0x1]
      %v1683 = vld [vmem:[%s1660 + $0x50] sm:$0x1]
      %v1684 = vld [vmem:[%s1660 + $0x5c] sm:$0x1]
      %v1685 = vld [vmem:[%s1660] sm:$0xe]
      %v1686 = vld [vmem:[%s1660 + $0xc] sm:$0xe]
      %v1687 = vld [vmem:[%s1660 + $0x18] sm:$0xe]
      %v1688 = vld [vmem:[%s1660 + $0x24] sm:$0xe]
      %v1689 = vld [vmem:[%s1660 + $0x30] sm:$0xe]
      %v1690 = vld [vmem:[%s1660 + $0x3c] sm:$0xe]
      %v1691 = vld [vmem:[%s1660 + $0x48] sm:$0xe]
      %v1692 = vld [vmem:[%s1660 + $0x54] sm:$0xe]
      %v1709 = vunpack.c.l.b16 %v1628
      %v1710 = vunpack.c.l.b16 %v1629
      %v1711 = vunpack.c.l.b16 %v1630
      %v1712 = vunpack.c.l.b16 %v1631
      %v1713 = vunpack.c.l.b16 %v1632
      %v1714 = vunpack.c.l.b16 %v1633
      %v1715 = vunpack.c.l.b16 %v1634
      %v1716 = vunpack.c.l.b16 %v1635
      %v1717 = vunpack.c.l.b16 %v1636
      %v1718 = vunpack.c.l.b16 %v1637
      %v1719 = vunpack.c.l.b16 %v1638
      %v1720 = vunpack.c.l.b16 %v1639
      %v1721 = vunpack.c.l.b16 %v1640
      %v1722 = vunpack.c.l.b16 %v1641
      %v1723 = vunpack.c.l.b16 %v1642
      %v1724 = vunpack.c.l.b16 %v1643
      %v1725 = vpack.c.b16 %v1710, %v1709
      %v1726 = vpack.c.b16 %v1712, %v1711
      %v1727 = vpack.c.b16 %v1714, %v1713
      %v1728 = vpack.c.b16 %v1716, %v1715
      %v1729 = vpack.c.b16 %v1718, %v1717
      %v1730 = vpack.c.b16 %v1720, %v1719
      %v1731 = vpack.c.b16 %v1722, %v1721
      %v1732 = vpack.c.b16 %v1724, %v1723
      %v1741 = vunpack.c.l.b16 %v1644
      %v1742 = vunpack.c.l.b16 %v1645
      %v1743 = vunpack.c.l.b16 %v1646
      %v1744 = vunpack.c.l.b16 %v1647
      %v1745 = vunpack.c.l.b16 %v1648
      %v1746 = vunpack.c.l.b16 %v1649
      %v1747 = vunpack.c.l.b16 %v1650
      %v1748 = vunpack.c.l.b16 %v1651
      %v1749 = vpack.c.b16 %v1741, %v1741
      %v1750 = vpack.c.b16 %v1742, %v1742
      %v1751 = vpack.c.b16 %v1743, %v1743
      %v1752 = vpack.c.b16 %v1744, %v1744
      %v1753 = vpack.c.b16 %v1745, %v1745
      %v1754 = vpack.c.b16 %v1746, %v1746
      %v1755 = vpack.c.b16 %v1747, %v1747
      %v1756 = vpack.c.b16 %v1748, %v1748
      %v1758 = vshrl.u32 %v1725, 16
      %v1760 = vshll.u32 %v1725, 16
      %v1762 = vrot.slane %v1760, 1
      %v1763 = vor.u32 %v1758, %v1762
      %v1765 = vshll.u32 %v1749, 16
      %v1767 = vrot.slane %v1765, 1
      %v1768 = vsel %vm963, %v1763, %v1767
      %v1770 = vshrl.u32 %v1726, 16
      %v1772 = vshll.u32 %v1726, 16
      %v1774 = vrot.slane %v1772, 1
      %v1775 = vor.u32 %v1770, %v1774
      %v1777 = vshll.u32 %v1750, 16
      %v1779 = vrot.slane %v1777, 1
      %v1780 = vsel %vm963, %v1775, %v1779
      %v1782 = vshrl.u32 %v1727, 16
      %v1784 = vshll.u32 %v1727, 16
      %v1786 = vrot.slane %v1784, 1
      %v1787 = vor.u32 %v1782, %v1786
      %v1789 = vshll.u32 %v1751, 16
      %v1791 = vrot.slane %v1789, 1
      %v1792 = vsel %vm963, %v1787, %v1791
      %v1794 = vshrl.u32 %v1728, 16
      %v1796 = vshll.u32 %v1728, 16
      %v1798 = vrot.slane %v1796, 1
      %v1799 = vor.u32 %v1794, %v1798
      %v1801 = vshll.u32 %v1752, 16
      %v1803 = vrot.slane %v1801, 1
      %v1804 = vsel %vm963, %v1799, %v1803
      %v1806 = vshrl.u32 %v1729, 16
      %v1808 = vshll.u32 %v1729, 16
      %v1810 = vrot.slane %v1808, 1
      %v1811 = vor.u32 %v1806, %v1810
      %v1813 = vshll.u32 %v1753, 16
      %v1815 = vrot.slane %v1813, 1
      %v1816 = vsel %vm963, %v1811, %v1815
      %v1818 = vshrl.u32 %v1730, 16
      %v1820 = vshll.u32 %v1730, 16
      %v1822 = vrot.slane %v1820, 1
      %v1823 = vor.u32 %v1818, %v1822
      %v1825 = vshll.u32 %v1754, 16
      %v1827 = vrot.slane %v1825, 1
      %v1828 = vsel %vm963, %v1823, %v1827
      %v1830 = vshrl.u32 %v1731, 16
      %v1832 = vshll.u32 %v1731, 16
      %v1834 = vrot.slane %v1832, 1
      %v1835 = vor.u32 %v1830, %v1834
      %v1837 = vshll.u32 %v1755, 16
      %v1839 = vrot.slane %v1837, 1
      %v1840 = vsel %vm963, %v1835, %v1839
      %v1842 = vshrl.u32 %v1732, 16
      %v1844 = vshll.u32 %v1732, 16
      %v1846 = vrot.slane %v1844, 1
      %v1847 = vor.u32 %v1842, %v1846
      %v1849 = vshll.u32 %v1756, 16
      %v1851 = vrot.slane %v1849, 1
      %v1852 = vsel %vm963, %v1847, %v1851
      %1853 = vrot.lane.b32.xlu0 %v1768, 4
      %v1854 = vpop.permute.xlu0 %1853
      %1855 = vrot.lane.b32.xlu0 %v1780, 4
      %v1856 = vpop.permute.xlu0 %1855
      %1857 = vrot.lane.b32.xlu0 %v1792, 4
      %v1858 = vpop.permute.xlu0 %1857
      %1859 = vrot.lane.b32.xlu0 %v1804, 4
      %v1860 = vpop.permute.xlu0 %1859
      %1861 = vrot.lane.b32.xlu0 %v1816, 4
      %v1862 = vpop.permute.xlu0 %1861
      %1863 = vrot.lane.b32.xlu0 %v1828, 4
      %v1864 = vpop.permute.xlu0 %1863
      %1865 = vrot.lane.b32.xlu0 %v1840, 4
      %v1866 = vpop.permute.xlu0 %1865
      %1867 = vrot.lane.b32.xlu0 %v1852, 4
      %v1868 = vpop.permute.xlu0 %1867
      %v1877 = vunpack.c.l.b16 %v1652
      %v1878 = vunpack.c.l.b16 %v1653
      %v1879 = vunpack.c.l.b16 %v1654
      %v1880 = vunpack.c.l.b16 %v1655
      %v1881 = vunpack.c.l.b16 %v1656
      %v1882 = vunpack.c.l.b16 %v1657
      %v1883 = vunpack.c.l.b16 %v1658
      %v1884 = vunpack.c.l.b16 %v1659
      %v1885 = vpack.c.b16 %v1710, %v1877
      %v1886 = vpack.c.b16 %v1712, %v1878
      %v1887 = vpack.c.b16 %v1714, %v1879
      %v1888 = vpack.c.b16 %v1716, %v1880
      %v1889 = vpack.c.b16 %v1718, %v1881
      %v1890 = vpack.c.b16 %v1720, %v1882
      %v1891 = vpack.c.b16 %v1722, %v1883
      %v1892 = vpack.c.b16 %v1724, %v1884
      %v1893 = vrot.slane %v1885, 1
      %v1894 = vrot.slane %v1749, 1
      %v1895 = vsel %vm1100, %v1893, %v1894
      %v1896 = vrot.slane %v1886, 1
      %v1897 = vrot.slane %v1750, 1
      %v1898 = vsel %vm1100, %v1896, %v1897
      %v1899 = vrot.slane %v1887, 1
      %v1900 = vrot.slane %v1751, 1
      %v1901 = vsel %vm1100, %v1899, %v1900
      %v1902 = vrot.slane %v1888, 1
      %v1903 = vrot.slane %v1752, 1
      %v1904 = vsel %vm1100, %v1902, %v1903
      %v1905 = vrot.slane %v1889, 1
      %v1906 = vrot.slane %v1753, 1
      %v1907 = vsel %vm1100, %v1905, %v1906
      %v1908 = vrot.slane %v1890, 1
      %v1909 = vrot.slane %v1754, 1
      %v1910 = vsel %vm1100, %v1908, %v1909
      %v1911 = vrot.slane %v1891, 1
      %v1912 = vrot.slane %v1755, 1
      %v1913 = vsel %vm1100, %v1911, %v1912
      %v1914 = vrot.slane %v1892, 1
      %v1915 = vrot.slane %v1756, 1
      %v1916 = vsel %vm1100, %v1914, %v1915
      %1917 = vrot.lane.b32.xlu0 %v1895, 8
      %v1918 = vpop.permute.xlu0 %1917
      %1919 = vrot.lane.b32.xlu0 %v1898, 8
      %v1920 = vpop.permute.xlu0 %1919
      %1921 = vrot.lane.b32.xlu0 %v1901, 8
      %v1922 = vpop.permute.xlu0 %1921
      %1923 = vrot.lane.b32.xlu0 %v1904, 8
      %v1924 = vpop.permute.xlu0 %1923
      %1925 = vrot.lane.b32.xlu0 %v1907, 8
      %v1926 = vpop.permute.xlu0 %1925
      %1927 = vrot.lane.b32.xlu0 %v1910, 8
      %v1928 = vpop.permute.xlu0 %1927
      %1929 = vrot.lane.b32.xlu0 %v1913, 8
      %v1930 = vpop.permute.xlu0 %1929
      %1931 = vrot.lane.b32.xlu0 %v1916, 8
      %v1932 = vpop.permute.xlu0 %1931
      %v1949 = vunpack.c.l.b16 %v1661
      %v1950 = vunpack.c.l.b16 %v1662
      %v1951 = vunpack.c.l.b16 %v1663
      %v1952 = vunpack.c.l.b16 %v1664
      %v1953 = vunpack.c.l.b16 %v1665
      %v1954 = vunpack.c.l.b16 %v1666
      %v1955 = vunpack.c.l.b16 %v1667
      %v1956 = vunpack.c.l.b16 %v1668
      %v1957 = vunpack.c.l.b16 %v1669
      %v1958 = vunpack.c.l.b16 %v1670
      %v1959 = vunpack.c.l.b16 %v1671
      %v1960 = vunpack.c.l.b16 %v1672
      %v1961 = vunpack.c.l.b16 %v1673
      %v1962 = vunpack.c.l.b16 %v1674
      %v1963 = vunpack.c.l.b16 %v1675
      %v1964 = vunpack.c.l.b16 %v1676
      %v1965 = vpack.c.b16 %v1950, %v1949
      %v1966 = vpack.c.b16 %v1952, %v1951
      %v1967 = vpack.c.b16 %v1954, %v1953
      %v1968 = vpack.c.b16 %v1956, %v1955
      %v1969 = vpack.c.b16 %v1958, %v1957
      %v1970 = vpack.c.b16 %v1960, %v1959
      %v1971 = vpack.c.b16 %v1962, %v1961
      %v1972 = vpack.c.b16 %v1964, %v1963
      %1973 = vrot.lane.b32.xlu0 %v1965, 12
      %v1974 = vpop.permute.xlu0 %1973
      %1975 = vrot.lane.b32.xlu0 %v1966, 12
      %v1976 = vpop.permute.xlu0 %1975
      %1977 = vrot.lane.b32.xlu0 %v1967, 12
      %v1978 = vpop.permute.xlu0 %1977
      %1979 = vrot.lane.b32.xlu0 %v1968, 12
      %v1980 = vpop.permute.xlu0 %1979
      %1981 = vrot.lane.b32.xlu0 %v1969, 12
      %v1982 = vpop.permute.xlu0 %1981
      %1983 = vrot.lane.b32.xlu0 %v1970, 12
      %v1984 = vpop.permute.xlu0 %1983
      %1985 = vrot.lane.b32.xlu0 %v1971, 12
      %v1986 = vpop.permute.xlu0 %1985
      %1987 = vrot.lane.b32.xlu0 %v1972, 12
      %v1988 = vpop.permute.xlu0 %1987
      %v1997 = vunpack.c.l.b16 %v1677
      %v1998 = vunpack.c.l.b16 %v1678
      %v1999 = vunpack.c.l.b16 %v1679
      %v2000 = vunpack.c.l.b16 %v1680
      %v2001 = vunpack.c.l.b16 %v1681
      %v2002 = vunpack.c.l.b16 %v1682
      %v2003 = vunpack.c.l.b16 %v1683
      %v2004 = vunpack.c.l.b16 %v1684
      %v2005 = vpack.c.b16 %v1997, %v1997
      %v2006 = vpack.c.b16 %v1998, %v1998
      %v2007 = vpack.c.b16 %v1999, %v1999
      %v2008 = vpack.c.b16 %v2000, %v2000
      %v2009 = vpack.c.b16 %v2001, %v2001
      %v2010 = vpack.c.b16 %v2002, %v2002
      %v2011 = vpack.c.b16 %v2003, %v2003
      %v2012 = vpack.c.b16 %v2004, %v2004
      %v2014 = vshrl.u32 %v1965, 16
      %v2016 = vshll.u32 %v1965, 16
      %v2018 = vrot.slane %v2016, 1
      %v2019 = vor.u32 %v2014, %v2018
      %v2021 = vshll.u32 %v2005, 16
      %v2023 = vrot.slane %v2021, 1
      %v2024 = vsel %vm963, %v2019, %v2023
      %v2026 = vshrl.u32 %v1966, 16
      %v2028 = vshll.u32 %v1966, 16
      %v2030 = vrot.slane %v2028, 1
      %v2031 = vor.u32 %v2026, %v2030
      %v2033 = vshll.u32 %v2006, 16
      %v2035 = vrot.slane %v2033, 1
      %v2036 = vsel %vm963, %v2031, %v2035
      %v2038 = vshrl.u32 %v1967, 16
      %v2040 = vshll.u32 %v1967, 16
      %v2042 = vrot.slane %v2040, 1
      %v2043 = vor.u32 %v2038, %v2042
      %v2045 = vshll.u32 %v2007, 16
      %v2047 = vrot.slane %v2045, 1
      %v2048 = vsel %vm963, %v2043, %v2047
      %v2050 = vshrl.u32 %v1968, 16
      %v2052 = vshll.u32 %v1968, 16
      %v2054 = vrot.slane %v2052, 1
      %v2055 = vor.u32 %v2050, %v2054
      %v2057 = vshll.u32 %v2008, 16
      %v2059 = vrot.slane %v2057, 1
      %v2060 = vsel %vm963, %v2055, %v2059
      %v2062 = vshrl.u32 %v1969, 16
      %v2064 = vshll.u32 %v1969, 16
      %v2066 = vrot.slane %v2064, 1
      %v2067 = vor.u32 %v2062, %v2066
      %v2069 = vshll.u32 %v2009, 16
      %v2071 = vrot.slane %v2069, 1
      %v2072 = vsel %vm963, %v2067, %v2071
      %v2074 = vshrl.u32 %v1970, 16
      %v2076 = vshll.u32 %v1970, 16
      %v2078 = vrot.slane %v2076, 1
      %v2079 = vor.u32 %v2074, %v2078
      %v2081 = vshll.u32 %v2010, 16
      %v2083 = vrot.slane %v2081, 1
      %v2084 = vsel %vm963, %v2079, %v2083
      %v2086 = vshrl.u32 %v1971, 16
      %v2088 = vshll.u32 %v1971, 16
      %v2090 = vrot.slane %v2088, 1
      %v2091 = vor.u32 %v2086, %v2090
      %v2093 = vshll.u32 %v2011, 16
      %v2095 = vrot.slane %v2093, 1
      %v2096 = vsel %vm963, %v2091, %v2095
      %v2098 = vshrl.u32 %v1972, 16
      %v2100 = vshll.u32 %v1972, 16
      %v2102 = vrot.slane %v2100, 1
      %v2103 = vor.u32 %v2098, %v2102
      %v2105 = vshll.u32 %v2012, 16
      %v2107 = vrot.slane %v2105, 1
      %v2108 = vsel %vm963, %v2103, %v2107
      %2109 = vrot.lane.b32.xlu0 %v2024, 16
      %v2110 = vpop.permute.xlu0 %2109
      %2111 = vrot.lane.b32.xlu0 %v2036, 16
      %v2112 = vpop.permute.xlu0 %2111
      %2113 = vrot.lane.b32.xlu0 %v2048, 16
      %v2114 = vpop.permute.xlu0 %2113
      %2115 = vrot.lane.b32.xlu0 %v2060, 16
      %v2116 = vpop.permute.xlu0 %2115
      %2117 = vrot.lane.b32.xlu0 %v2072, 16
      %v2118 = vpop.permute.xlu0 %2117
      %2119 = vrot.lane.b32.xlu0 %v2084, 16
      %v2120 = vpop.permute.xlu0 %2119
      %2121 = vrot.lane.b32.xlu0 %v2096, 16
      %v2122 = vpop.permute.xlu0 %2121
      %2123 = vrot.lane.b32.xlu0 %v2108, 16
      %v2124 = vpop.permute.xlu0 %2123
      %v2133 = vunpack.c.l.b16 %v1685
      %v2134 = vunpack.c.l.b16 %v1686
      %v2135 = vunpack.c.l.b16 %v1687
      %v2136 = vunpack.c.l.b16 %v1688
      %v2137 = vunpack.c.l.b16 %v1689
      %v2138 = vunpack.c.l.b16 %v1690
      %v2139 = vunpack.c.l.b16 %v1691
      %v2140 = vunpack.c.l.b16 %v1692
      %v2141 = vpack.c.b16 %v1950, %v2133
      %v2142 = vpack.c.b16 %v1952, %v2134
      %v2143 = vpack.c.b16 %v1954, %v2135
      %v2144 = vpack.c.b16 %v1956, %v2136
      %v2145 = vpack.c.b16 %v1958, %v2137
      %v2146 = vpack.c.b16 %v1960, %v2138
      %v2147 = vpack.c.b16 %v1962, %v2139
      %v2148 = vpack.c.b16 %v1964, %v2140
      %v2149 = vrot.slane %v2141, 1
      %v2150 = vrot.slane %v2005, 1
      %v2151 = vsel %vm1100, %v2149, %v2150
      %v2152 = vrot.slane %v2142, 1
      %v2153 = vrot.slane %v2006, 1
      %v2154 = vsel %vm1100, %v2152, %v2153
      %v2155 = vrot.slane %v2143, 1
      %v2156 = vrot.slane %v2007, 1
      %v2157 = vsel %vm1100, %v2155, %v2156
      %v2158 = vrot.slane %v2144, 1
      %v2159 = vrot.slane %v2008, 1
      %v2160 = vsel %vm1100, %v2158, %v2159
      %v2161 = vrot.slane %v2145, 1
      %v2162 = vrot.slane %v2009, 1
      %v2163 = vsel %vm1100, %v2161, %v2162
      %v2164 = vrot.slane %v2146, 1
      %v2165 = vrot.slane %v2010, 1
      %v2166 = vsel %vm1100, %v2164, %v2165
      %v2167 = vrot.slane %v2147, 1
      %v2168 = vrot.slane %v2011, 1
      %v2169 = vsel %vm1100, %v2167, %v2168
      %v2170 = vrot.slane %v2148, 1
      %v2171 = vrot.slane %v2012, 1
      %v2172 = vsel %vm1100, %v2170, %v2171
      %2173 = vrot.lane.b32.xlu0 %v2151, 20
      %v2174 = vpop.permute.xlu0 %2173
      %2175 = vrot.lane.b32.xlu0 %v2154, 20
      %v2176 = vpop.permute.xlu0 %2175
      %2177 = vrot.lane.b32.xlu0 %v2157, 20
      %v2178 = vpop.permute.xlu0 %2177
      %2179 = vrot.lane.b32.xlu0 %v2160, 20
      %v2180 = vpop.permute.xlu0 %2179
      %2181 = vrot.lane.b32.xlu0 %v2163, 20
      %v2182 = vpop.permute.xlu0 %2181
      %2183 = vrot.lane.b32.xlu0 %v2166, 20
      %v2184 = vpop.permute.xlu0 %2183
      %2185 = vrot.lane.b32.xlu0 %v2169, 20
      %v2186 = vpop.permute.xlu0 %2185
      %2187 = vrot.lane.b32.xlu0 %v2172, 20
      %v2188 = vpop.permute.xlu0 %2187
      %v2190 = vsel %vm1397, %v1725, %v1854
      %v2192 = vsel %vm1397, %v1726, %v1856
      %v2194 = vsel %vm1397, %v1727, %v1858
      %v2196 = vsel %vm1397, %v1728, %v1860
      %v2198 = vsel %vm1397, %v1729, %v1862
      %v2200 = vsel %vm1397, %v1730, %v1864
      %v2202 = vsel %vm1397, %v1731, %v1866
      %v2204 = vsel %vm1397, %v1732, %v1868
      %v2206 = vsel %vm1414, %v2190, %v1918
      %v2208 = vsel %vm1414, %v2192, %v1920
      %v2210 = vsel %vm1414, %v2194, %v1922
      %v2212 = vsel %vm1414, %v2196, %v1924
      %v2214 = vsel %vm1414, %v2198, %v1926
      %v2216 = vsel %vm1414, %v2200, %v1928
      %v2218 = vsel %vm1414, %v2202, %v1930
      %v2220 = vsel %vm1414, %v2204, %v1932
      %v2222 = vsel %vm1431, %v2206, %v1974
      %v2224 = vsel %vm1431, %v2208, %v1976
      %v2226 = vsel %vm1431, %v2210, %v1978
      %v2228 = vsel %vm1431, %v2212, %v1980
      %v2230 = vsel %vm1431, %v2214, %v1982
      %v2232 = vsel %vm1431, %v2216, %v1984
      %v2234 = vsel %vm1431, %v2218, %v1986
      %v2236 = vsel %vm1431, %v2220, %v1988
      %v2238 = vsel %vm1448, %v2222, %v2110
      %v2240 = vsel %vm1448, %v2224, %v2112
      %v2242 = vsel %vm1448, %v2226, %v2114
      %v2244 = vsel %vm1448, %v2228, %v2116
      %v2246 = vsel %vm1448, %v2230, %v2118
      %v2248 = vsel %vm1448, %v2232, %v2120
      %v2250 = vsel %vm1448, %v2234, %v2122
      %v2252 = vsel %vm1448, %v2236, %v2124
      %v2254 = vsel %vm1465, %v2238, %v2174
      %v2256 = vsel %vm1465, %v2240, %v2176
      %v2258 = vsel %vm1465, %v2242, %v2178
      %v2260 = vsel %vm1465, %v2244, %v2180
      %v2262 = vsel %vm1465, %v2246, %v2182
      %v2264 = vsel %vm1465, %v2248, %v2184
      %v2266 = vsel %vm1465, %v2250, %v2186
      %v2268 = vsel %vm1465, %v2252, %v2188
      %s2269 = scalar_lea.vmem %s3, 12
      %v2270 = vld [vmem:[%s2269] sm:$0xf]
      %v2271 = vld [vmem:[%s2269 + $0x4] sm:$0xf]
      %v2272 = vld [vmem:[%s2269 + $0x8] sm:$0xf]
      %v2276 = vunpack.c.l.b16 %v2270
      %v2277 = vunpack.c.l.b16 %v2271
      %v2278 = vunpack.c.l.b16 %v2272
      %v2279 = vpack.c.b16 %v2277, %v2276
      %v2280 = vpack.c.b16 %v2278, %v2278
      %v2282 = vsel %vm1494, %v2254, 0
      %v2284 = vsel %vm1494, %v2256, 0
      %v2286 = vsel %vm1494, %v2258, 0
      %v2288 = vsel %vm1494, %v2260, 0
      %v2290 = vsel %vm1494, %v2262, 0
      %v2292 = vsel %vm1494, %v2264, 0
      %v2294 = vsel %vm1494, %v2266, 0
      %v2296 = vsel %vm1494, %v2268, 0
      %v2299 = vsel %vm1511, %v2280, 0
      %2301 = vmatprep.subr.bf16.mxu0 0
      %2302 = vmatpush1.bf16.msra.mxu0 %v2279
      %2303 = vmatprep.subr.bf16.mxu0 0
      %2304 = vmatpush1.bf16.msra.mxu0 %v2299
      %2305 = vmatprep.subr.bf16.mxu0 0
      %2306 = vmatpush1.bf16.msra.mxu0 0
      %2307 = vmatprep.subr.bf16.mxu0 0
      %2308 = vmatpush1.bf16.msra.mxu0 0
      %2309 = vmatprep.subr.bf16.mxu0 0
      %2310 = vmatpush1.bf16.msra.mxu0 0
      %2311 = vmatprep.subr.bf16.mxu0 0
      %2312 = vmatpush1.bf16.msra.mxu0 0
      %2313 = vmatprep.subr.bf16.mxu0 0
      %2314 = vmatpush1.bf16.msra.mxu0 0
      %2315 = vmatprep.subr.bf16.mxu0 0
      %2316 = vmatpush1.bf16.msra.mxu0 0
      %2317 = vmatprep.subr.bf16.mxu0 0
      %2318 = vmatpush1.bf16.msra.mxu0 0
      %2319 = vmatprep.subr.bf16.mxu0 0
      %2320 = vmatpush1.bf16.msra.mxu0 0
      %2321 = vmatprep.subr.bf16.mxu0 0
      %2322 = vmatpush1.bf16.msra.mxu0 0
      %2323 = vmatprep.subr.bf16.mxu0 0
      %2324 = vmatpush1.bf16.msra.mxu0 0
      %2325 = vmatprep.subr.bf16.mxu0 0
      %2326 = vmatpush1.bf16.msra.mxu0 0
      %2327 = vmatprep.subr.bf16.mxu0 0
      %2328 = vmatpush1.bf16.msra.mxu0 0
      %2329 = vmatprep.subr.bf16.mxu0 0
      %2330 = vmatpush1.bf16.msra.mxu0 0
      %2331 = vmatprep.subr.bf16.mxu0 0
      %2332 = vmatpush1.bf16.msra.mxu0 0
      %2333 = vmatprep.mubr.bf16.mxu0 0
      %2334 = vmatmul.mubr.bf16.gmra.mrb[0].mxu0 %v2282
      %v2335 = vpop.f32.mrb[0].mxu0
      %v2336 = vadd.f32 %v833, %v2335
      %v2337 = vpop.f32.mrb[0].mxu0
      %v2338 = vpop.f32.mrb[0].mxu0
      %v2339 = vadd.f32 %v833, %v2338
      %v2340 = vpop.f32.mrb[0].mxu0
      %2341 = vmatprep.mubr.bf16.mxu0 0
      %2342 = vmatmul.mubr.bf16.gmra.mrb[0].mxu0 %v2284
      %v2343 = vpop.f32.mrb[0].mxu0
      %v2344 = vadd.f32 %v833, %v2343
      %v2345 = vpop.f32.mrb[0].mxu0
      %v2346 = vpop.f32.mrb[0].mxu0
      %v2347 = vadd.f32 %v833, %v2346
      %v2348 = vpop.f32.mrb[0].mxu0
      %2349 = vmatprep.mubr.bf16.mxu0 0
      %2350 = vmatmul.mubr.bf16.gmra.mrb[0].mxu0 %v2286
      %v2351 = vpop.f32.mrb[0].mxu0
      %v2352 = vadd.f32 %v833, %v2351
      %v2353 = vpop.f32.mrb[0].mxu0
      %v2354 = vpop.f32.mrb[0].mxu0
      %v2355 = vadd.f32 %v833, %v2354
      %v2356 = vpop.f32.mrb[0].mxu0
      %2357 = vmatprep.mubr.bf16.mxu0 0
      %2358 = vmatmul.mubr.bf16.gmra.mrb[0].mxu0 %v2288
      %v2359 = vpop.f32.mrb[0].mxu0
      %v2360 = vadd.f32 %v833, %v2359
      %v2361 = vpop.f32.mrb[0].mxu0
      %v2362 = vpop.f32.mrb[0].mxu0
      %v2363 = vadd.f32 %v833, %v2362
      %v2364 = vpop.f32.mrb[0].mxu0
      %2365 = vmatprep.mubr.bf16.mxu0 0
      %2366 = vmatmul.mubr.bf16.gmra.mrb[0].mxu0 %v2290
      %v2367 = vpop.f32.mrb[0].mxu0
      %v2368 = vadd.f32 %v833, %v2367
      %v2369 = vpop.f32.mrb[0].mxu0
      %v2370 = vpop.f32.mrb[0].mxu0
      %v2371 = vadd.f32 %v833, %v2370
      %v2372 = vpop.f32.mrb[0].mxu0
      %2373 = vmatprep.mubr.bf16.mxu0 0
      %2374 = vmatmul.mubr.bf16.gmra.mrb[0].mxu0 %v2292
      %v2375 = vpop.f32.mrb[0].mxu0
      %v2376 = vadd.f32 %v833, %v2375
      %v2377 = vpop.f32.mrb[0].mxu0
      %v2378 = vpop.f32.mrb[0].mxu0
      %v2379 = vadd.f32 %v833, %v2378
      %v2380 = vpop.f32.mrb[0].mxu0
      %2381 = vmatprep.mubr.bf16.mxu0 0
      %2382 = vmatmul.mubr.bf16.gmra.mrb[0].mxu0 %v2294
      %v2383 = vpop.f32.mrb[0].mxu0
      %v2384 = vadd.f32 %v833, %v2383
      %v2385 = vpop.f32.mrb[0].mxu0
      %v2386 = vpop.f32.mrb[0].mxu0
      %v2387 = vadd.f32 %v833, %v2386
      %v2388 = vpop.f32.mrb[0].mxu0
      %2389 = vmatprep.mubr.bf16.mxu0 0
      %2390 = vmatmul.mubr.bf16.gmra.mrb[0].mxu0 %v2296
      %v2391 = vpop.f32.mrb[0].mxu0
      %v2392 = vadd.f32 %v833, %v2391
      %v2393 = vpop.f32.mrb[0].mxu0
      %v2394 = vpop.f32.mrb[0].mxu0
      %v2395 = vadd.f32 %v833, %v2394
      %v2396 = vpop.f32.mrb[0].mxu0
      %2397 = vdwg.mxu0
      %s2398 = scalar_lea.vmem %s391, 16
      %2399 = vst.msk [vmem:[%s2398] sm:$0xff] %vm1414, %v2336
      %2400 = vst.msk [vmem:[%s2398 + $0x8] sm:$0xff] %vm1414, %v2339
      %2401 = vst.msk [vmem:[%s2398 + $0x20] sm:$0xff] %vm1414, %v2344
      %2402 = vst.msk [vmem:[%s2398 + $0x28] sm:$0xff] %vm1414, %v2347
      %2403 = vst.msk [vmem:[%s2398 + $0x40] sm:$0xff] %vm1414, %v2352
      %2404 = vst.msk [vmem:[%s2398 + $0x48] sm:$0xff] %vm1414, %v2355
      %2405 = vst.msk [vmem:[%s2398 + $0x60] sm:$0xff] %vm1414, %v2360
      %2406 = vst.msk [vmem:[%s2398 + $0x68] sm:$0xff] %vm1414, %v2363
      %2407 = vst.msk [vmem:[%s2398 + $0x80] sm:$0xff] %vm1414, %v2368
      %2408 = vst.msk [vmem:[%s2398 + $0x88] sm:$0xff] %vm1414, %v2371
      %2409 = vst.msk [vmem:[%s2398 + $0xa0] sm:$0xff] %vm1414, %v2376
      %2410 = vst.msk [vmem:[%s2398 + $0xa8] sm:$0xff] %vm1414, %v2379
      %2411 = vst.msk [vmem:[%s2398 + $0xc0] sm:$0xff] %vm1414, %v2384
      %2412 = vst.msk [vmem:[%s2398 + $0xc8] sm:$0xff] %vm1414, %v2387
      %2413 = vst.msk [vmem:[%s2398 + $0xe0] sm:$0xff] %vm1414, %v2392
      %2414 = vst.msk [vmem:[%s2398 + $0xe8] sm:$0xff] %vm1414, %v2395
      %s2415 = smul.u32 8, %s21
      %p2416 = scmp.lt.s32.totalorder %s20, 1
      %s2417 = scalar_select %p2416, %s20, 1
      %p2418 = scmp.lt.s32.totalorder %s2415, 15
      %s2419 = scalar_select %p2418, %s2415, 15
      %s2420 = smul.addr %s2419, 4
      %s2421 = smul.addr %s2417, 64
      %s2422 = sadd.s32 %s2420, %s2421
      %s2423 = smul.addr %s2422, 8
      %s2424 = scalar_lea.vmem %s5, %s2423
      // Predicated region
      $region41: #{tpu_custom_call.1} parent=39 // pred_check
        %p2425 = pneg %p190
      $region42: #{tpu_custom_call.1} parent=39 // pred_check_branch
        %2427 = sbr.rel (%p2425) target = $region44
      $region43: #{tpu_custom_call.1} parent=39 // pred_region
        %s2428 = smul.u32 8, %s21
      $region44: #{tpu_custom_call.1} parent=39 // pred_fallthru
        _
    $region40: #{tpu_custom_call.1} parent=5 // pred_fallthru
      _
    %p2429 = scmp.le.s32.totalorder 2, %s11
    // Predicated region
    $region45: #{tpu_custom_call.1} parent=5 // pred_check
      %p2430 = pneg %p2429
    $region46: #{tpu_custom_call.1} parent=5 // pred_check_branch
      %2432 = sbr.rel (%p2430) target = $region48
    $region47: #{tpu_custom_call.1} parent=5 // pred_region
      %s2433 = ssub.s32 %s11, 2
      // Predicated region
      $region49: #{tpu_custom_call.1} parent=47 // pred_check
        %p2434 = pneg %p196
      $region50: #{tpu_custom_call.1} parent=47 // pred_check_branch
        %2436 = sbr.rel (%p2434) target = $region52
      $region51: #{tpu_custom_call.1} parent=47 // pred_region
        %s2437 = smul.u32 8, %s23
        %p2438 = scmp.lt.s32.totalorder %s22, 1
        %s2439 = scalar_select %p2438, %s22, 1
        %p2440 = scmp.lt.s32.totalorder %s2437, 15
        %s2441 = scalar_select %p2440, %s2437, 15
        %s2442 = smul.addr %s2441, 4
        %s2443 = smul.addr %s2439, 64
        %s2444 = sadd.s32 %s2442, %s2443
        %s2445 = smul.addr %s2444, 8
        %s2446 = scalar_lea.vmem %s5, %s2445
      $region52: #{tpu_custom_call.1} parent=47 // pred_fallthru
        _
    $region48: #{tpu_custom_call.1} parent=5 // pred_fallthru
      _
  $region6: #{tpu_custom_call.1} parent=0 // loop_footer
    %s15 = sadd.s32 1, %s11
  $region7: #{tpu_custom_call.1} parent=0 // loop_footer_branch
    %10 = sbr.rel target = $region3
  $region8: #{tpu_custom_call.1} parent=0 // loop_exit
    _

</llo_original>
